<compile_context>
chip_gen: v7x
topology: tpu7x:2x2x1
jax: 0.10.0
libtpu: 0.0.40
codegen_flags: <defaults>
</compile_context>

<pallas_src>
import jax
import jax.numpy as jnp
from jax import lax
from jax.experimental import pallas as pl
from jax.experimental.pallas import tpu as pltpu

LN_EPS = 1e-5  # PyTorch nn.LayerNorm default


def _gelu_exact(v):
    # nn.GELU default = exact erf-based GELU
    return 0.5 * v * (1.0 + lax.erf(v * 0.7071067811865476))


def _layer_norm(v, g, b):
    mu = jnp.mean(v, axis=-1, keepdims=True)
    var = jnp.mean(jnp.square(v - mu), axis=-1, keepdims=True)
    return (v - mu) * lax.rsqrt(var + LN_EPS) * g + b


# ---------------------------------------------------------------------------
# Fused kernel: one grid step = (batch tile b, layer l).
#   l == 0          : patch projection -> resident activation scratch
#   every l         : LN -> token-mix MLP -> residual -> LN -> channel-mix MLP
#   l == L-1        : final LayerNorm epilogue -> output block
# ---------------------------------------------------------------------------
def _fused_mixer_kernel(
    patches_ref, pw_ref, pb_ref,          # patch projection
    ln_g_ref, ln_b_ref,                   # per-layer LN (shared within a layer)
    tw1_ref, tb1_ref, tw2_ref, tb2_ref,   # token-mixing MLP
    cw1_ref, cb1_ref, cw2_ref, cb2_ref,   # channel-mixing MLP
    ln_gf_ref, ln_bf_ref,                 # final LN
    o_ref,                                # output (Bt, S, C)
    acc_ref,                              # VMEM scratch: resident activation
):
    l = pl.program_id(1)
    n_layers = pl.num_programs(1)
    Bt, S, C = acc_ref.shape
    wdt = pw_ref.dtype                    # matmul operand dtype (f32 or bf16)

    # ---- prologue: patch projection only on the first layer step ----------
    @pl.when(l == 0)
    def _():
        K = patches_ref.shape[-1]
        p2 = patches_ref[...].reshape(Bt * S, K).astype(wdt)
        tok = jnp.dot(p2, pw_ref[...], preferred_element_type=jnp.float32)
        acc_ref[...] = (tok + pb_ref[...]).reshape(Bt, S, C)

    x = acc_ref[...]                      # (Bt, S, C) f32, resident across l
    g = ln_g_ref[0]                       # (1, C)
    b = ln_b_ref[0]                       # (1, C)

    # ---- token mixing (weights on the left: no in-kernel transposes) ------
    x1 = _layer_norm(x, g, b)                                     # (Bt, S, C)
    w1 = jnp.broadcast_to(tw1_ref[0], (Bt,) + tw1_ref.shape[1:])  # (Bt, Dt, S)
    h = jnp.einsum("bds,bsc->bdc", w1, x1.astype(wdt),
                   preferred_element_type=jnp.float32)            # (Bt, Dt, C)
    h = _gelu_exact(h + tb1_ref[0])                               # +(Dt,1) bias
    w2 = jnp.broadcast_to(tw2_ref[0], (Bt,) + tw2_ref.shape[1:])  # (Bt, S, Dt)
    x4 = jnp.einsum("bsd,bdc->bsc", w2, h.astype(wdt),
                    preferred_element_type=jnp.float32) + tb2_ref[0]
    y1 = x + x4                                                   # (Bt, S, C)

    # ---- channel mixing on the flattened (Bt*S, C) view -------------------
    y1f = y1.reshape(Bt * S, C)
    y2f = _layer_norm(y1f, g, b)
    h2 = _gelu_exact(
        jnp.dot(y2f.astype(wdt), cw1_ref[0], preferred_element_type=jnp.float32)
        + cb1_ref[0])                                             # (Bt*S, Dc)
    y3f = (jnp.dot(h2.astype(wdt), cw2_ref[0], preferred_element_type=jnp.float32)
           + cb2_ref[0])                                          # (Bt*S, C)
    yf = y1f + y3f

    acc_ref[...] = yf.reshape(Bt, S, C)

    # ---- epilogue: final LayerNorm fused into the last layer step ---------
    @pl.when(l == n_layers - 1)
    def _():
        out = _layer_norm(yf, ln_gf_ref[...], ln_bf_ref[...])
        o_ref[...] = out.reshape(Bt, S, C).astype(o_ref.dtype)


# ---------------------------------------------------------------------------
# Wrapper: host-side layout plumbing + one pallas_call for the full model
# ---------------------------------------------------------------------------
def mlp_mixer_forward(x_img, proj_w, proj_b, layers, ln_g_f, ln_b_f, patch,
                      *, matmul_dtype=jnp.float32, batch_tile=None):
    B, Cin, H, W = x_img.shape
    Cout = proj_w.shape[0]
    P = patch
    Hp, Wp = H // P, W // P
    S = Hp * Wp
    K = Cin * P * P
    L = len(layers)

    # NCHW -> (B, S, Cin*P*P), patch-inner order (ci, kh, kw) to match Conv2d
    patches = (
        x_img.reshape(B, Cin, Hp, P, Wp, P)
        .transpose(0, 2, 4, 1, 3, 5)
        .reshape(B, S, K)
    ).astype(matmul_dtype)
    pw = proj_w.reshape(Cout, K).T.astype(matmul_dtype)           # (K, C)
    pb = proj_b.reshape(1, Cout).astype(jnp.float32)

    # Stack per-layer params with a leading layer axis.
    stack = lambda name: jnp.stack([lp[name] for lp in layers])
    ln_g = stack("ln_g").reshape(L, 1, Cout).astype(jnp.float32)
    ln_b = stack("ln_b").reshape(L, 1, Cout).astype(jnp.float32)
    tw1 = stack("tw1").astype(matmul_dtype)                       # (L, Dt, S)
    tb1 = stack("tb1").reshape(L, -1, 1).astype(jnp.float32)      # (L, Dt, 1)
    tw2 = stack("tw2").astype(matmul_dtype)                       # (L, S, Dt)
    tb2 = stack("tb2").reshape(L, -1, 1).astype(jnp.float32)      # (L, S, 1)
    cw1 = jnp.stack([lp["cw1"].T for lp in layers]).astype(matmul_dtype)  # (L, C, Dc)
    cb1 = stack("cb1").reshape(L, 1, -1).astype(jnp.float32)      # (L, 1, Dc)
    cw2 = jnp.stack([lp["cw2"].T for lp in layers]).astype(matmul_dtype)  # (L, Dc, C)
    cb2 = stack("cb2").reshape(L, 1, -1).astype(jnp.float32)      # (L, 1, C)
    gf = ln_g_f.reshape(1, Cout).astype(jnp.float32)
    bf = ln_b_f.reshape(1, Cout).astype(jnp.float32)

    Dt = tw1.shape[1]
    Dc = cw1.shape[2]

    # Batch tile: aim for Bt*S >= 256 rows to feed the MXU, but Bt must divide B.
    if batch_tile is None:
        bt = min(B, max(1, 256 // max(S, 1)))
        while B % bt:
            bt -= 1
    else:
        bt = batch_tile
    nb = B // bt

    def per_layer(shape2d):
        return pl.BlockSpec((1,) + tuple(shape2d), lambda b, l: (l, 0, 0))

    def const(shape):
        n = len(shape)
        return pl.BlockSpec(tuple(shape), lambda b, l: (0,) * n)

    return pl.pallas_call(
        _fused_mixer_kernel,
        out_shape=jax.ShapeDtypeStruct((B, S, Cout), jnp.float32),
        grid_spec=pltpu.PrefetchScalarGridSpec(
            num_scalar_prefetch=0,
            grid=(nb, L),
            in_specs=[
                pl.BlockSpec((bt, S, K), lambda b, l: (b, 0, 0)),  # patches
                const((K, Cout)), const((1, Cout)),                # proj w, b
                per_layer((1, Cout)), per_layer((1, Cout)),        # ln g, b
                per_layer((Dt, S)), per_layer((Dt, 1)),            # token W1, b1
                per_layer((S, Dt)), per_layer((S, 1)),             # token W2, b2
                per_layer((Cout, Dc)), per_layer((1, Dc)),         # chan  W1, b1
                per_layer((Dc, Cout)), per_layer((1, Cout)),       # chan  W2, b2
                const((1, Cout)), const((1, Cout)),                # final LN
            ],
            out_specs=pl.BlockSpec((bt, S, Cout), lambda b, l: (b, 0, 0)),
            scratch_shapes=[pltpu.VMEM((bt, S, Cout), jnp.float32)],
        ),
        compiler_params=pltpu.CompilerParams(
            dimension_semantics=("parallel", "arbitrary"),
            vmem_limit_bytes=48 * 1024 * 1024,   # fits v5e/v6e/v7x physical VMEM
        ),
    )(patches, pw, pb, ln_g, ln_b, tw1, tb1, tw2, tb2, cw1, cb1, cw2, cb2, gf, bf)


# ---------------------------------------------------------------------------
# Pure-JAX reference mirroring the PyTorch module exactly
# ---------------------------------------------------------------------------
def reference_forward(x_img, proj_w, proj_b, layers, ln_g_f, ln_b_f, patch):
    B, Cin, H, W = x_img.shape
    Cout = proj_w.shape[0]
    P = patch
    Hp, Wp = H // P, W // P
    S = Hp * Wp
    patches = (
        x_img.reshape(B, Cin, Hp, P, Wp, P)
        .transpose(0, 2, 4, 1, 3, 5)
        .reshape(B, S, Cin * P * P)
    )
    tok = patches @ proj_w.reshape(Cout, -1).T + proj_b

    def ln(v, g, b):
        mu = jnp.mean(v, -1, keepdims=True)
        var = jnp.mean(jnp.square(v - mu), -1, keepdims=True)
        return (v - mu) * lax.rsqrt(var + LN_EPS) * g + b

    gelu = lambda v: 0.5 * v * (1.0 + lax.erf(v * 0.7071067811865476))

    for lp in layers:
        x1 = ln(tok, lp["ln_g"], lp["ln_b"])
        x2 = jnp.swapaxes(x1, 1, 2)                    # (B, C, S)
        h = gelu(x2 @ lp["tw1"].T + lp["tb1"])
        x3 = h @ lp["tw2"].T + lp["tb2"]
        x4 = jnp.swapaxes(x3, 1, 2)
        y1 = tok + x4
        y2 = ln(y1, lp["ln_g"], lp["ln_b"])
        h2 = gelu(y2 @ lp["cw1"].T + lp["cb1"])
        y3 = h2 @ lp["cw2"].T + lp["cb2"]
        tok = y1 + y3
    return ln(tok, ln_g_f, ln_b_f)


if __name__ == "__main__":
    # Small but consistent config: 16x16 image, patch 4 -> S = 16 tokens
    B, Cin, H, W = 2, 3, 16, 16
    P = 4
    C = 32                       # hidden_size_c
    S = (H // P) * (W // P)      # seq_length_s = 16
    layer_num = 2
    dc, ds = 0.5, 4
    # mlp_mixer passes (ds, dc) into mlp_layer's (dc, ds) slots, so:
    Dt = int(ds * S)             # token-mixing hidden = 64
    Dc = int(dc * C)             # channel-mixing hidden = 16

    keys = jax.random.split(jax.random.PRNGKey(0), 64)
    _ki = iter(keys)

    def nrm(shape, scale):
        return scale * jax.random.normal(next(_ki), shape, dtype=jnp.float32)

    x_img = jax.random.normal(next(_ki), (B, Cin, H, W), dtype=jnp.float32)

    proj_w = nrm((C, Cin, P, P), 0.1)      # Conv2d weight (Cout, Cin, P, P)
    proj_b = nrm((C,), 0.1)

    layers = []
    for _ in range(layer_num):
        layers.append(dict(
            ln_g=1.0 + nrm((C,), 0.1), ln_b=nrm((C,), 0.1),
            tw1=nrm((Dt, S), 0.1), tb1=nrm((Dt,), 0.1),   # Linear(S -> Dt)
            tw2=nrm((S, Dt), 0.1), tb2=nrm((S,), 0.1),    # Linear(Dt -> S)
            cw1=nrm((Dc, C), 0.1), cb1=nrm((Dc,), 0.1),   # Linear(C -> Dc)
            cw2=nrm((C, Dc), 0.1), cb2=nrm((C,), 0.1),    # Linear(Dc -> C)
        ))
    ln_g_f = 1.0 + nrm((C,), 0.1)
    ln_b_f = nrm((C,), 0.1)

    ref = reference_forward(x_img, proj_w, proj_b, layers, ln_g_f, ln_b_f, P)

    # f32 matmuls: bit-for-bit semantics of the PyTorch module (tight check)
    out = mlp_mixer_forward(x_img, proj_w, proj_b, layers, ln_g_f, ln_b_f, P)
    out = jax.block_until_ready(out)
    err = float(jnp.max(jnp.abs(out - ref)))
    if err > 5e-3:
        raise AssertionError(f"f32 Pallas output mismatch vs reference, max abs err = {err}")

    # bf16 matmul operands (f32 accumulation): perf path, looser tolerance
    out_bf16 = mlp_mixer_forward(x_img, proj_w, proj_b, layers, ln_g_f, ln_b_f, P,
                                 matmul_dtype=jnp.bfloat16)
    out_bf16 = jax.block_until_ready(out_bf16)
    err_bf16 = float(jnp.max(jnp.abs(out_bf16 - ref)))
    if err_bf16 > 5e-2:
        raise AssertionError(f"bf16 Pallas output mismatch vs reference, max abs err = {err_bf16}")

    print("KERNEL_OK")
</pallas_src>

<mosaic_0001>
module attributes {stable_mosaic.version = 11 : i64} {
  func.func @_fused_mixer_kernel(%arg0: i32, %arg1: i32, %arg2: memref<2x16x48xf32, #tpu.memory_space<vmem>>, %arg3: memref<48x32xf32, #tpu.memory_space<vmem>>, %arg4: memref<1x32xf32, #tpu.memory_space<vmem>>, %arg5: memref<1x1x32xf32, #tpu.memory_space<vmem>>, %arg6: memref<1x1x32xf32, #tpu.memory_space<vmem>>, %arg7: memref<1x64x16xf32, #tpu.memory_space<vmem>>, %arg8: memref<1x64x1xf32, #tpu.memory_space<vmem>>, %arg9: memref<1x16x64xf32, #tpu.memory_space<vmem>>, %arg10: memref<1x16x1xf32, #tpu.memory_space<vmem>>, %arg11: memref<1x32x16xf32, #tpu.memory_space<vmem>>, %arg12: memref<1x1x16xf32, #tpu.memory_space<vmem>>, %arg13: memref<1x16x32xf32, #tpu.memory_space<vmem>>, %arg14: memref<1x1x32xf32, #tpu.memory_space<vmem>>, %arg15: memref<1x32xf32, #tpu.memory_space<vmem>>, %arg16: memref<1x32xf32, #tpu.memory_space<vmem>>, %arg17: memref<2x16x32xf32, #tpu.memory_space<vmem>>, %arg18: memref<2x16x32xf32, #tpu.memory_space<vmem>>) attributes {dimension_semantics = [#tpu.dimension_semantics<parallel>, #tpu.dimension_semantics<arbitrary>], iteration_bounds = array<i64: 1, 2>, scalar_prefetch = 0 : i64, scratch_operands = 1 : i64, tpu.core_type = #tpu.core_type<tc>, window_params = [{transform_indices = @transform_0, window_bounds = array<i64: 2, 16, 48>}, {pipeline_mode = #tpu.pipeline_mode<synchronous>, transform_indices = @transform_1, window_bounds = array<i64: 48, 32>}, {pipeline_mode = #tpu.pipeline_mode<synchronous>, transform_indices = @transform_2, window_bounds = array<i64: 1, 32>}, {transform_indices = @transform_3, window_bounds = array<i64: 1, 1, 32>}, {transform_indices = @transform_4, window_bounds = array<i64: 1, 1, 32>}, {transform_indices = @transform_5, window_bounds = array<i64: 1, 64, 16>}, {transform_indices = @transform_6, window_bounds = array<i64: 1, 64, 1>}, {transform_indices = @transform_7, window_bounds = array<i64: 1, 16, 64>}, {transform_indices = @transform_8, window_bounds = array<i64: 1, 16, 1>}, {transform_indices = @transform_9, window_bounds = array<i64: 1, 32, 16>}, {transform_indices = @transform_10, window_bounds = array<i64: 1, 1, 16>}, {transform_indices = @transform_11, window_bounds = array<i64: 1, 16, 32>}, {transform_indices = @transform_12, window_bounds = array<i64: 1, 1, 32>}, {pipeline_mode = #tpu.pipeline_mode<synchronous>, transform_indices = @transform_13, window_bounds = array<i64: 1, 32>}, {pipeline_mode = #tpu.pipeline_mode<synchronous>, transform_indices = @transform_14, window_bounds = array<i64: 1, 32>}, {transform_indices = @transform_15, window_bounds = array<i64: 2, 16, 32>}]} {
    %c0_i32 = arith.constant 0 : i32
    %0 = arith.cmpi eq, %arg1, %c0_i32 : i32
    %1 = arith.extui %0 : i1 to i32
    %c0_i32_0 = arith.constant 0 : i32
    %2 = arith.cmpi ne, %1, %c0_i32_0 : i32
    scf.if %2 {
      %c0_56 = arith.constant 0 : index
      %c0_57 = arith.constant 0 : index
      %c0_58 = arith.constant 0 : index
      %112 = vector.load %arg2[%c0_56, %c0_57, %c0_58] : memref<2x16x48xf32, #tpu.memory_space<vmem>>, vector<2x16x48xf32>
      %113 = vector.shape_cast %112 : vector<2x16x48xf32> to vector<32x48xf32>
      %c0_59 = arith.constant 0 : index
      %c0_60 = arith.constant 0 : index
      %114 = vector.load %arg3[%c0_59, %c0_60] : memref<48x32xf32, #tpu.memory_space<vmem>>, vector<48x32xf32>
      %cst_61 = arith.constant dense<0.000000e+00> : vector<32x32xf32>
      %115 = tpu.matmul %113, %114, %cst_61 {dimension_numbers = #tpu.dot_dimension_numbers<[1], [0], [0], [1], [0, 0, 1, 1], [], []>} : vector<32x48xf32>, vector<48x32xf32>, vector<32x32xf32> -> vector<32x32xf32>
      %c0_62 = arith.constant 0 : index
      %c0_63 = arith.constant 0 : index
      %116 = vector.load %arg4[%c0_62, %c0_63] : memref<1x32xf32, #tpu.memory_space<vmem>>, vector<1x32xf32>
      %117 = vector.broadcast %116 : vector<1x32xf32> to vector<32x32xf32>
      %118 = arith.addf %115, %117 : vector<32x32xf32>
      %119 = vector.shape_cast %118 : vector<32x32xf32> to vector<2x16x32xf32>
      %c0_64 = arith.constant 0 : index
      %c0_65 = arith.constant 0 : index
      %c0_66 = arith.constant 0 : index
      %120 = vector.load %arg18[%c0_64, %c0_65, %c0_66] : memref<2x16x32xf32, #tpu.memory_space<vmem>>, vector<2x16x32xf32>
      tpu.vector_store %arg18[%c0_64, %c0_65, %c0_66], %119 {strides = array<i32>} : memref<2x16x32xf32, #tpu.memory_space<vmem>>, vector<2x16x32xf32>,
    } else {
    }
    %c0 = arith.constant 0 : index
    %c0_1 = arith.constant 0 : index
    %c0_2 = arith.constant 0 : index
    %3 = vector.load %arg18[%c0, %c0_1, %c0_2] : memref<2x16x32xf32, #tpu.memory_space<vmem>>, vector<2x16x32xf32>
    %c0_3 = arith.constant 0 : index
    %c0_4 = arith.constant 0 : index
    %c0_5 = arith.constant 0 : index
    %4 = vector.load %arg5[%c0_3, %c0_4, %c0_5] : memref<1x1x32xf32, #tpu.memory_space<vmem>>, vector<1x1x32xf32>
    %5 = vector.shape_cast %4 : vector<1x1x32xf32> to vector<1x32xf32>
    %c0_6 = arith.constant 0 : index
    %c0_7 = arith.constant 0 : index
    %c0_8 = arith.constant 0 : index
    %6 = vector.load %arg6[%c0_6, %c0_7, %c0_8] : memref<1x1x32xf32, #tpu.memory_space<vmem>>, vector<1x1x32xf32>
    %7 = vector.shape_cast %6 : vector<1x1x32xf32> to vector<1x32xf32>
    %cst = arith.constant dense<0.000000e+00> : vector<2x16xf32>
    %8 = vector.multi_reduction <add>, %3, %cst [2] : vector<2x16x32xf32> to vector<2x16xf32>
    %9 = vector.shape_cast %8 : vector<2x16xf32> to vector<2x16x1xf32>
    %cst_9 = arith.constant 3.200000e+01 : f32
    %10 = vector.broadcast %cst_9 : f32 to vector<2x16x1xf32>
    %11 = arith.divf %9, %10 : vector<2x16x1xf32>
    %12 = vector.broadcast %11 : vector<2x16x1xf32> to vector<2x16x32xf32>
    %13 = arith.subf %3, %12 : vector<2x16x32xf32>
    %14 = arith.mulf %13, %13 : vector<2x16x32xf32>
    %cst_10 = arith.constant dense<0.000000e+00> : vector<2x16xf32>
    %15 = vector.multi_reduction <add>, %14, %cst_10 [2] : vector<2x16x32xf32> to vector<2x16xf32>
    %16 = vector.shape_cast %15 : vector<2x16xf32> to vector<2x16x1xf32>
    %cst_11 = arith.constant 3.200000e+01 : f32
    %17 = vector.broadcast %cst_11 : f32 to vector<2x16x1xf32>
    %18 = arith.divf %16, %17 : vector<2x16x1xf32>
    %19 = vector.broadcast %11 : vector<2x16x1xf32> to vector<2x16x32xf32>
    %20 = arith.subf %3, %19 : vector<2x16x32xf32>
    %cst_12 = arith.constant 9.99999974E-6 : f32
    %21 = vector.broadcast %cst_12 : f32 to vector<2x16x1xf32>
    %22 = arith.addf %18, %21 : vector<2x16x1xf32>
    %23 = math.rsqrt %22 : vector<2x16x1xf32>
    %24 = vector.broadcast %23 : vector<2x16x1xf32> to vector<2x16x32xf32>
    %25 = arith.mulf %20, %24 : vector<2x16x32xf32>
    %26 = vector.shape_cast %5 : vector<1x32xf32> to vector<1x1x32xf32>
    %27 = vector.broadcast %26 : vector<1x1x32xf32> to vector<2x16x32xf32>
    %28 = arith.mulf %25, %27 : vector<2x16x32xf32>
    %29 = vector.shape_cast %7 : vector<1x32xf32> to vector<1x1x32xf32>
    %30 = vector.broadcast %29 : vector<1x1x32xf32> to vector<2x16x32xf32>
    %31 = arith.addf %28, %30 : vector<2x16x32xf32>
    %c0_13 = arith.constant 0 : index
    %c0_14 = arith.constant 0 : index
    %c0_15 = arith.constant 0 : index
    %32 = vector.load %arg7[%c0_13, %c0_14, %c0_15] : memref<1x64x16xf32, #tpu.memory_space<vmem>>, vector<1x64x16xf32>
    %33 = vector.shape_cast %32 : vector<1x64x16xf32> to vector<64x16xf32>
    %34 = vector.shape_cast %33 : vector<64x16xf32> to vector<1x64x16xf32>
    %35 = vector.broadcast %34 : vector<1x64x16xf32> to vector<2x64x16xf32>
    "tpu.trace_start"() <{level = 10 : i32, message = "bds,bsc->bdc"}> : () -> ()
    %cst_16 = arith.constant dense<0.000000e+00> : vector<2x64x32xf32>
    %36 = tpu.matmul %35, %31, %cst_16 {dimension_numbers = #tpu.dot_dimension_numbers<[2], [1], [1], [2], [0, 0, 0, 1, 1, 2], [0], [0]>} : vector<2x64x16xf32>, vector<2x16x32xf32>, vector<2x64x32xf32> -> vector<2x64x32xf32>
    "tpu.trace_stop"() : () -> ()
    %c0_17 = arith.constant 0 : index
    %c0_18 = arith.constant 0 : index
    %c0_19 = arith.constant 0 : index
    %37 = vector.load %arg8[%c0_17, %c0_18, %c0_19] : memref<1x64x1xf32, #tpu.memory_space<vmem>>, vector<1x64x1xf32>
    %38 = vector.shape_cast %37 : vector<1x64x1xf32> to vector<64x1xf32>
    %39 = vector.shape_cast %38 : vector<64x1xf32> to vector<1x64x1xf32>
    %40 = vector.broadcast %39 : vector<1x64x1xf32> to vector<2x64x32xf32>
    %41 = arith.addf %36, %40 : vector<2x64x32xf32>
    %cst_20 = arith.constant 5.000000e-01 : f32
    %42 = vector.broadcast %cst_20 : f32 to vector<2x64x32xf32>
    %43 = arith.mulf %42, %41 : vector<2x64x32xf32>
    %cst_21 = arith.constant 0.707106769 : f32
    %44 = vector.broadcast %cst_21 : f32 to vector<2x64x32xf32>
    %45 = arith.mulf %41, %44 : vector<2x64x32xf32>
    %46 = math.erf %45 : vector<2x64x32xf32>
    %cst_22 = arith.constant 1.000000e+00 : f32
    %47 = vector.broadcast %cst_22 : f32 to vector<2x64x32xf32>
    %48 = arith.addf %47, %46 : vector<2x64x32xf32>
    %49 = arith.mulf %43, %48 : vector<2x64x32xf32>
    %c0_23 = arith.constant 0 : index
    %c0_24 = arith.constant 0 : index
    %c0_25 = arith.constant 0 : index
    %50 = vector.load %arg9[%c0_23, %c0_24, %c0_25] : memref<1x16x64xf32, #tpu.memory_space<vmem>>, vector<1x16x64xf32>
    %51 = vector.shape_cast %50 : vector<1x16x64xf32> to vector<16x64xf32>
    %52 = vector.shape_cast %51 : vector<16x64xf32> to vector<1x16x64xf32>
    %53 = vector.broadcast %52 : vector<1x16x64xf32> to vector<2x16x64xf32>
    "tpu.trace_start"() <{level = 10 : i32, message = "bsd,bdc->bsc"}> : () -> ()
    %cst_26 = arith.constant dense<0.000000e+00> : vector<2x16x32xf32>
    %54 = tpu.matmul %53, %49, %cst_26 {dimension_numbers = #tpu.dot_dimension_numbers<[2], [1], [1], [2], [0, 0, 0, 1, 1, 2], [0], [0]>} : vector<2x16x64xf32>, vector<2x64x32xf32>, vector<2x16x32xf32> -> vector<2x16x32xf32>
    "tpu.trace_stop"() : () -> ()
    %c0_27 = arith.constant 0 : index
    %c0_28 = arith.constant 0 : index
    %c0_29 = arith.constant 0 : index
    %55 = vector.load %arg10[%c0_27, %c0_28, %c0_29] : memref<1x16x1xf32, #tpu.memory_space<vmem>>, vector<1x16x1xf32>
    %56 = vector.shape_cast %55 : vector<1x16x1xf32> to vector<16x1xf32>
    %57 = vector.shape_cast %56 : vector<16x1xf32> to vector<1x16x1xf32>
    %58 = vector.broadcast %57 : vector<1x16x1xf32> to vector<2x16x32xf32>
    %59 = arith.addf %54, %58 : vector<2x16x32xf32>
    %60 = arith.addf %3, %59 : vector<2x16x32xf32>
    %61 = vector.shape_cast %60 : vector<2x16x32xf32> to vector<32x32xf32>
    %cst_30 = arith.constant dense<0.000000e+00> : vector<32xf32>
    %62 = vector.multi_reduction <add>, %61, %cst_30 [1] : vector<32x32xf32> to vector<32xf32>
    %63 = vector.shape_cast %62 : vector<32xf32> to vector<32x1xf32>
    %cst_31 = arith.constant 3.200000e+01 : f32
    %64 = vector.broadcast %cst_31 : f32 to vector<32x1xf32>
    %65 = arith.divf %63, %64 : vector<32x1xf32>
    %66 = vector.broadcast %65 : vector<32x1xf32> to vector<32x32xf32>
    %67 = arith.subf %61, %66 : vector<32x32xf32>
    %68 = arith.mulf %67, %67 : vector<32x32xf32>
    %cst_32 = arith.constant dense<0.000000e+00> : vector<32xf32>
    %69 = vector.multi_reduction <add>, %68, %cst_32 [1] : vector<32x32xf32> to vector<32xf32>
    %70 = vector.shape_cast %69 : vector<32xf32> to vector<32x1xf32>
    %cst_33 = arith.constant 3.200000e+01 : f32
    %71 = vector.broadcast %cst_33 : f32 to vector<32x1xf32>
    %72 = arith.divf %70, %71 : vector<32x1xf32>
    %73 = vector.broadcast %65 : vector<32x1xf32> to vector<32x32xf32>
    %74 = arith.subf %61, %73 : vector<32x32xf32>
    %cst_34 = arith.constant 9.99999974E-6 : f32
    %75 = vector.broadcast %cst_34 : f32 to vector<32x1xf32>
    %76 = arith.addf %72, %75 : vector<32x1xf32>
    %77 = math.rsqrt %76 : vector<32x1xf32>
    %78 = vector.broadcast %77 : vector<32x1xf32> to vector<32x32xf32>
    %79 = arith.mulf %74, %78 : vector<32x32xf32>
    %80 = vector.broadcast %5 : vector<1x32xf32> to vector<32x32xf32>
    %81 = arith.mulf %79, %80 : vector<32x32xf32>
    %82 = vector.broadcast %7 : vector<1x32xf32> to vector<32x32xf32>
    %83 = arith.addf %81, %82 : vector<32x32xf32>
    %c0_35 = arith.constant 0 : index
    %c0_36 = arith.constant 0 : index
    %c0_37 = arith.constant 0 : index
    %84 = vector.load %arg11[%c0_35, %c0_36, %c0_37] : memref<1x32x16xf32, #tpu.memory_space<vmem>>, vector<1x32x16xf32>
    %85 = vector.shape_cast %84 : vector<1x32x16xf32> to vector<32x16xf32>
    %cst_38 = arith.constant dense<0.000000e+00> : vector<32x16xf32>
    %86 = tpu.matmul %83, %85, %cst_38 {dimension_numbers = #tpu.dot_dimension_numbers<[1], [0], [0], [1], [0, 0, 1, 1], [], []>} : vector<32x32xf32>, vector<32x16xf32>, vector<32x16xf32> -> vector<32x16xf32>
    %c0_39 = arith.constant 0 : index
    %c0_40 = arith.constant 0 : index
    %c0_41 = arith.constant 0 : index
    %87 = vector.load %arg12[%c0_39, %c0_40, %c0_41] : memref<1x1x16xf32, #tpu.memory_space<vmem>>, vector<1x1x16xf32>
    %88 = vector.shape_cast %87 : vector<1x1x16xf32> to vector<1x16xf32>
    %89 = vector.broadcast %88 : vector<1x16xf32> to vector<32x16xf32>
    %90 = arith.addf %86, %89 : vector<32x16xf32>
    %cst_42 = arith.constant 5.000000e-01 : f32
    %91 = vector.broadcast %cst_42 : f32 to vector<32x16xf32>
    %92 = arith.mulf %91, %90 : vector<32x16xf32>
    %cst_43 = arith.constant 0.707106769 : f32
    %93 = vector.broadcast %cst_43 : f32 to vector<32x16xf32>
    %94 = arith.mulf %90, %93 : vector<32x16xf32>
    %95 = math.erf %94 : vector<32x16xf32>
    %cst_44 = arith.constant 1.000000e+00 : f32
    %96 = vector.broadcast %cst_44 : f32 to vector<32x16xf32>
    %97 = arith.addf %96, %95 : vector<32x16xf32>
    %98 = arith.mulf %92, %97 : vector<32x16xf32>
    %c0_45 = arith.constant 0 : index
    %c0_46 = arith.constant 0 : index
    %c0_47 = arith.constant 0 : index
    %99 = vector.load %arg13[%c0_45, %c0_46, %c0_47] : memref<1x16x32xf32, #tpu.memory_space<vmem>>, vector<1x16x32xf32>
    %100 = vector.shape_cast %99 : vector<1x16x32xf32> to vector<16x32xf32>
    %cst_48 = arith.constant dense<0.000000e+00> : vector<32x32xf32>
    %101 = tpu.matmul %98, %100, %cst_48 {dimension_numbers = #tpu.dot_dimension_numbers<[1], [0], [0], [1], [0, 0, 1, 1], [], []>} : vector<32x16xf32>, vector<16x32xf32>, vector<32x32xf32> -> vector<32x32xf32>
    %c0_49 = arith.constant 0 : index
    %c0_50 = arith.constant 0 : index
    %c0_51 = arith.constant 0 : index
    %102 = vector.load %arg14[%c0_49, %c0_50, %c0_51] : memref<1x1x32xf32, #tpu.memory_space<vmem>>, vector<1x1x32xf32>
    %103 = vector.shape_cast %102 : vector<1x1x32xf32> to vector<1x32xf32>
    %104 = vector.broadcast %103 : vector<1x32xf32> to vector<32x32xf32>
    %105 = arith.addf %101, %104 : vector<32x32xf32>
    %106 = arith.addf %61, %105 : vector<32x32xf32>
    %107 = vector.shape_cast %106 : vector<32x32xf32> to vector<2x16x32xf32>
    %c0_52 = arith.constant 0 : index
    %c0_53 = arith.constant 0 : index
    %c0_54 = arith.constant 0 : index
    %108 = vector.load %arg18[%c0_52, %c0_53, %c0_54] : memref<2x16x32xf32, #tpu.memory_space<vmem>>, vector<2x16x32xf32>
    tpu.vector_store %arg18[%c0_52, %c0_53, %c0_54], %107 {strides = array<i32>} : memref<2x16x32xf32, #tpu.memory_space<vmem>>, vector<2x16x32xf32>,
    %c1_i32 = arith.constant 1 : i32
    %109 = arith.cmpi eq, %arg1, %c1_i32 : i32
    %110 = arith.extui %109 : i1 to i32
    %c0_i32_55 = arith.constant 0 : i32
    %111 = arith.cmpi ne, %110, %c0_i32_55 : i32
    scf.if %111 {
      %c0_56 = arith.constant 0 : index
      %c0_57 = arith.constant 0 : index
      %112 = vector.load %arg15[%c0_56, %c0_57] : memref<1x32xf32, #tpu.memory_space<vmem>>, vector<1x32xf32>
      %c0_58 = arith.constant 0 : index
      %c0_59 = arith.constant 0 : index
      %113 = vector.load %arg16[%c0_58, %c0_59] : memref<1x32xf32, #tpu.memory_space<vmem>>, vector<1x32xf32>
      %cst_60 = arith.constant dense<0.000000e+00> : vector<32xf32>
      %114 = vector.multi_reduction <add>, %106, %cst_60 [1] : vector<32x32xf32> to vector<32xf32>
      %115 = vector.shape_cast %114 : vector<32xf32> to vector<32x1xf32>
      %cst_61 = arith.constant 3.200000e+01 : f32
      %116 = vector.broadcast %cst_61 : f32 to vector<32x1xf32>
      %117 = arith.divf %115, %116 : vector<32x1xf32>
      %118 = vector.broadcast %117 : vector<32x1xf32> to vector<32x32xf32>
      %119 = arith.subf %106, %118 : vector<32x32xf32>
      %120 = arith.mulf %119, %119 : vector<32x32xf32>
      %cst_62 = arith.constant dense<0.000000e+00> : vector<32xf32>
      %121 = vector.multi_reduction <add>, %120, %cst_62 [1] : vector<32x32xf32> to vector<32xf32>
      %122 = vector.shape_cast %121 : vector<32xf32> to vector<32x1xf32>
      %cst_63 = arith.constant 3.200000e+01 : f32
      %123 = vector.broadcast %cst_63 : f32 to vector<32x1xf32>
      %124 = arith.divf %122, %123 : vector<32x1xf32>
      %125 = vector.broadcast %117 : vector<32x1xf32> to vector<32x32xf32>
      %126 = arith.subf %106, %125 : vector<32x32xf32>
      %cst_64 = arith.constant 9.99999974E-6 : f32
      %127 = vector.broadcast %cst_64 : f32 to vector<32x1xf32>
      %128 = arith.addf %124, %127 : vector<32x1xf32>
      %129 = math.rsqrt %128 : vector<32x1xf32>
      %130 = vector.broadcast %129 : vector<32x1xf32> to vector<32x32xf32>
      %131 = arith.mulf %126, %130 : vector<32x32xf32>
      %132 = vector.broadcast %112 : vector<1x32xf32> to vector<32x32xf32>
      %133 = arith.mulf %131, %132 : vector<32x32xf32>
      %134 = vector.broadcast %113 : vector<1x32xf32> to vector<32x32xf32>
      %135 = arith.addf %133, %134 : vector<32x32xf32>
      %136 = vector.shape_cast %135 : vector<32x32xf32> to vector<2x16x32xf32>
      %c0_65 = arith.constant 0 : index
      %c0_66 = arith.constant 0 : index
      %c0_67 = arith.constant 0 : index
      %137 = vector.load %arg17[%c0_65, %c0_66, %c0_67] : memref<2x16x32xf32, #tpu.memory_space<vmem>>, vector<2x16x32xf32>
      tpu.vector_store %arg17[%c0_65, %c0_66, %c0_67], %136 {strides = array<i32>} : memref<2x16x32xf32, #tpu.memory_space<vmem>>, vector<2x16x32xf32>,
    } else {
    }
    return
  }
  func.func @transform_0(%arg0: i32, %arg1: i32) -> (i32, i32, i32) {
    %c0_i32 = arith.constant 0 : i32
    %c0_i32_0 = arith.constant 0 : i32
    %c0_i32_1 = arith.constant 0 : i32
    return %arg0, %c0_i32, %c0_i32_0 : i32, i32, i32
  }
  func.func @transform_1(%arg0: i32, %arg1: i32) -> (i32, i32) {
    %c0_i32 = arith.constant 0 : i32
    %c0_i32_0 = arith.constant 0 : i32
    %c0_i32_1 = arith.constant 0 : i32
    return %c0_i32, %c0_i32_0 : i32, i32
  }
  func.func @transform_2(%arg0: i32, %arg1: i32) -> (i32, i32) {
    %c0_i32 = arith.constant 0 : i32
    %c0_i32_0 = arith.constant 0 : i32
    %c0_i32_1 = arith.constant 0 : i32
    return %c0_i32, %c0_i32_0 : i32, i32
  }
  func.func @transform_3(%arg0: i32, %arg1: i32) -> (i32, i32, i32) {
    %c0_i32 = arith.constant 0 : i32
    %c0_i32_0 = arith.constant 0 : i32
    %c0_i32_1 = arith.constant 0 : i32
    return %arg1, %c0_i32, %c0_i32_0 : i32, i32, i32
  }
  func.func @transform_4(%arg0: i32, %arg1: i32) -> (i32, i32, i32) {
    %c0_i32 = arith.constant 0 : i32
    %c0_i32_0 = arith.constant 0 : i32
    %c0_i32_1 = arith.constant 0 : i32
    return %arg1, %c0_i32, %c0_i32_0 : i32, i32, i32
  }
  func.func @transform_5(%arg0: i32, %arg1: i32) -> (i32, i32, i32) {
    %c0_i32 = arith.constant 0 : i32
    %c0_i32_0 = arith.constant 0 : i32
    %c0_i32_1 = arith.constant 0 : i32
    return %arg1, %c0_i32, %c0_i32_0 : i32, i32, i32
  }
  func.func @transform_6(%arg0: i32, %arg1: i32) -> (i32, i32, i32) {
    %c0_i32 = arith.constant 0 : i32
    %c0_i32_0 = arith.constant 0 : i32
    %c0_i32_1 = arith.constant 0 : i32
    return %arg1, %c0_i32, %c0_i32_0 : i32, i32, i32
  }
  func.func @transform_7(%arg0: i32, %arg1: i32) -> (i32, i32, i32) {
    %c0_i32 = arith.constant 0 : i32
    %c0_i32_0 = arith.constant 0 : i32
    %c0_i32_1 = arith.constant 0 : i32
    return %arg1, %c0_i32, %c0_i32_0 : i32, i32, i32
  }
  func.func @transform_8(%arg0: i32, %arg1: i32) -> (i32, i32, i32) {
    %c0_i32 = arith.constant 0 : i32
    %c0_i32_0 = arith.constant 0 : i32
    %c0_i32_1 = arith.constant 0 : i32
    return %arg1, %c0_i32, %c0_i32_0 : i32, i32, i32
  }
  func.func @transform_9(%arg0: i32, %arg1: i32) -> (i32, i32, i32) {
    %c0_i32 = arith.constant 0 : i32
    %c0_i32_0 = arith.constant 0 : i32
    %c0_i32_1 = arith.constant 0 : i32
    return %arg1, %c0_i32, %c0_i32_0 : i32, i32, i32
  }
  func.func @transform_10(%arg0: i32, %arg1: i32) -> (i32, i32, i32) {
    %c0_i32 = arith.constant 0 : i32
    %c0_i32_0 = arith.constant 0 : i32
    %c0_i32_1 = arith.constant 0 : i32
    return %arg1, %c0_i32, %c0_i32_0 : i32, i32, i32
  }
  func.func @transform_11(%arg0: i32, %arg1: i32) -> (i32, i32, i32) {
    %c0_i32 = arith.constant 0 : i32
    %c0_i32_0 = arith.constant 0 : i32
    %c0_i32_1 = arith.constant 0 : i32
    return %arg1, %c0_i32, %c0_i32_0 : i32, i32, i32
  }
  func.func @transform_12(%arg0: i32, %arg1: i32) -> (i32, i32, i32) {
    %c0_i32 = arith.constant 0 : i32
    %c0_i32_0 = arith.constant 0 : i32
    %c0_i32_1 = arith.constant 0 : i32
    return %arg1, %c0_i32, %c0_i32_0 : i32, i32, i32
  }
  func.func @transform_13(%arg0: i32, %arg1: i32) -> (i32, i32) {
    %c0_i32 = arith.constant 0 : i32
    %c0_i32_0 = arith.constant 0 : i32
    %c0_i32_1 = arith.constant 0 : i32
    return %c0_i32, %c0_i32_0 : i32, i32
  }
  func.func @transform_14(%arg0: i32, %arg1: i32) -> (i32, i32) {
    %c0_i32 = arith.constant 0 : i32
    %c0_i32_0 = arith.constant 0 : i32
    %c0_i32_1 = arith.constant 0 : i32
    return %c0_i32, %c0_i32_0 : i32, i32
  }
  func.func @transform_15(%arg0: i32, %arg1: i32) -> (i32, i32, i32) {
    %c0_i32 = arith.constant 0 : i32
    %c0_i32_0 = arith.constant 0 : i32
    %c0_i32_1 = arith.constant 0 : i32
    return %arg0, %c0_i32, %c0_i32_0 : i32, i32, i32
  }
}

</mosaic_0001>

<llo_original>
// kernel: tpu_custom_call.1
$region0: #{tpu_custom_call.1}
  #allocation0 [shape = 'u32[]', space=smem, size = 0x4, offset = 0x4, fixed_abs, tag = 'smem constant byte address 0x4 - core index']
  #allocation1 [shape = 'u32[144,128]{1,0:T(1,128)}', space=vmem, size = 0x12000, scoped, tag = 'internal scratch']
  #allocation2 [shape = 'f32[2,16,32]{2,1,0:T(8,128)}', space=vmem, size = 0x4000, scoped, tag = 'scratch operand']
  %s0 = inlined_call_operand.vmem [shape: f32[2,16,48], index: 0, kind: input, shape index: {}]
  %s1 = inlined_call_operand.vmem [shape: f32[48,32], index: 1, kind: input, shape index: {}]
  %s2 = inlined_call_operand.vmem [shape: f32[1,32], index: 2, kind: input, shape index: {}]
  %s3 = inlined_call_operand.vmem [shape: f32[2,1,32], index: 3, kind: input, shape index: {}]
  %s4 = inlined_call_operand.vmem [shape: f32[2,1,32], index: 4, kind: input, shape index: {}]
  %s5 = inlined_call_operand.vmem [shape: f32[2,64,16], index: 5, kind: input, shape index: {}]
  %s6 = inlined_call_operand.vmem [shape: f32[2,64,1], index: 6, kind: input, shape index: {}]
  %s7 = inlined_call_operand.vmem [shape: f32[2,16,64], index: 7, kind: input, shape index: {}]
  %s8 = inlined_call_operand.vmem [shape: f32[2,16,1], index: 8, kind: input, shape index: {}]
  %s9 = inlined_call_operand.vmem [shape: f32[2,32,16], index: 9, kind: input, shape index: {}]
  %s10 = inlined_call_operand.vmem [shape: f32[2,1,16], index: 10, kind: input, shape index: {}]
  %s11 = inlined_call_operand.vmem [shape: f32[2,16,32], index: 11, kind: input, shape index: {}]
  %s12 = inlined_call_operand.vmem [shape: f32[2,1,32], index: 12, kind: input, shape index: {}]
  %s13 = inlined_call_operand.vmem [shape: f32[1,32], index: 13, kind: input, shape index: {}]
  %s14 = inlined_call_operand.vmem [shape: f32[1,32], index: 14, kind: input, shape index: {}]
  %s15 = inlined_call_operand.hbm [shape: f32[2,16,32], index: 15, kind: output, shape index: {}]
  %s16 = sld [smem:[#allocation0]]
  $region101: #{tpu_custom_call.1} parent=0
    _
  %s18 = ssub.s32 1, %s16
  %s19 = scalar_select 0, %s18, %s16
  $region1: #{tpu_custom_call.1} parent=0
    #allocation3 [shape = 'u8[16384]{0}', space=vmem, size = 0x4000, scoped, tag = 'output window, operand 0, single buffered']
    #allocation4 [shape = 's32[2]{0}', space=sflag, size = 0x8, scoped, tag = 'scoped memory for tpu_custom_call.1']
    %20 = vsyncpa [#allocation4], 0
    loop: start=0, step=1, limit=4
    $region2: #{tpu_custom_call.1} parent=1 // loop_pre_header
      _
    $region3: #{tpu_custom_call.1} parent=1 // loop_header
      %s22 = sphi 0, %s26
      %p23 = scmp.ge.s32.totalorder %s22, 4
      %s29 = sphi 0, %s41
      %s30 = sphi 0, %s37
      %s31 = sphi 0, %s29
      %s32 = sphi 0, %s30
      %s33 = sphi 0, %s31
      %s34 = sphi 0, %s32
      %s44 = sphi 0, %s46
      %s47 = sphi 0, %s44
      %s48 = sphi 0, %s47
      %s64 = sphi 0, %s48
      %s68 = sphi 0, %s68
      %s70 = sphi 0, %s68
      %s71 = sphi 0, %s70
      %s85 = sphi 0, %s71
      %s89 = sphi 0, %s89
      %s91 = sphi 0, %s89
      %s92 = sphi 0, %s91
      %s106 = sphi 0, %s92
      %s112 = sphi 0, %s114
      %s115 = sphi 0, %s112
      %s116 = sphi 0, %s115
      %s132 = sphi 0, %s116
      %s138 = sphi 0, %s140
      %s141 = sphi 0, %s138
      %s142 = sphi 0, %s141
      %s158 = sphi 0, %s142
      %s164 = sphi 0, %s166
      %s167 = sphi 0, %s164
      %s168 = sphi 0, %s167
      %s184 = sphi 0, %s168
      %s190 = sphi 0, %s192
      %s193 = sphi 0, %s190
      %s194 = sphi 0, %s193
      %s210 = sphi 0, %s194
      %s216 = sphi 0, %s218
      %s219 = sphi 0, %s216
      %s220 = sphi 0, %s219
      %s236 = sphi 0, %s220
      %s242 = sphi 0, %s244
      %s245 = sphi 0, %s242
      %s246 = sphi 0, %s245
      %s262 = sphi 0, %s246
      %s268 = sphi 0, %s270
      %s271 = sphi 0, %s268
      %s272 = sphi 0, %s271
      %s288 = sphi 0, %s272
      %s294 = sphi 0, %s296
      %s297 = sphi 0, %s294
      %s298 = sphi 0, %s297
      %s314 = sphi 0, %s298
      %s320 = sphi 0, %s322
      %s323 = sphi 0, %s320
      %s324 = sphi 0, %s323
      %s340 = sphi 0, %s324
      %s346 = sphi 0, %s348
      %s349 = sphi 0, %s346
      %s350 = sphi 0, %s349
      %s366 = sphi 0, %s350
      %s370 = sphi 0, %s370
      %s372 = sphi 0, %s370
      %s373 = sphi 0, %s372
      %s387 = sphi 0, %s373
      %s391 = sphi 0, %s391
      %s393 = sphi 0, %s391
      %s394 = sphi 0, %s393
      %s408 = sphi 0, %s394
      %s414 = sphi 0, %s416
      %s417 = sphi 0, %s414
      %s418 = sphi 0, %s417
      %s434 = sphi 0, %s418
    $region4: #{tpu_custom_call.1} parent=1 // loop_header_branch
      %25 = sbr.rel (%p23) target = $region8
    $region5: #{tpu_custom_call.1} parent=1 // loop_body
      %s27 = ssub.s32 %s22, 1
      %s28 = ssub.s32 %s22, 2
      %s35 = sadd.s32 1, %s30
      %p36 = scmp.ge.s32.totalorder %s35, 2
      %s37 = scalar_select %p36, 0, %s35
      %s38 = sadd.s32 1, %s29
      %s39 = scalar_select %p36, %s38, %s29
      %p40 = scmp.ge.s32.totalorder %s39, 1
      %s41 = scalar_select %p40, 0, %s39
      %s42 = ssub.s32 %s29, %s41
      %p43 = scmp.eq.s32.totalorder %s42, 0
      %s45 = sadd.s32 %s44, 1
      %s46 = scalar_select %p43, %s44, %s45
      %p49 = pneg %p43
      %p50 = scmp.eq.s32.totalorder %s22, 1
      %p51 = por %p49, %p50
      %p52 = scmp.ne.s32.totalorder %s44, %s47
      %p53 = scmp.eq.s32.totalorder %s22, 0
      %p54 = por %p52, %p53
      %p55 = scmp.ne.s32.totalorder %s44, %s47
      %p56 = scmp.eq.s32.totalorder %s27, 1
      %p57 = por %p55, %p56
      %p58 = scmp.ne.s32.totalorder %s47, %s48
      %p59 = scmp.eq.s32.totalorder %s27, 0
      %p60 = por %p58, %p59
      %p61 = scmp.ne.s32.totalorder %s47, %s48
      %p62 = scmp.eq.s32.totalorder %s28, 1
      %p63 = por %p61, %p62
      %p65 = scmp.ne.s32.totalorder %s48, %s64
      %p66 = scmp.eq.s32.totalorder %s28, 0
      %p67 = por %p65, %p66
      %s69 = sadd.s32 %s68, 1
      %p72 = scmp.eq.s32.totalorder %s22, 1
      %p73 = scmp.ne.s32.totalorder %s68, %s70
      %p74 = scmp.eq.s32.totalorder %s22, 0
      %p75 = por %p73, %p74
      %p76 = scmp.ne.s32.totalorder %s68, %s70
      %p77 = scmp.eq.s32.totalorder %s27, 1
      %p78 = por %p76, %p77
      %p79 = scmp.ne.s32.totalorder %s70, %s71
      %p80 = scmp.eq.s32.totalorder %s27, 0
      %p81 = por %p79, %p80
      %p82 = scmp.ne.s32.totalorder %s70, %s71
      %p83 = scmp.eq.s32.totalorder %s28, 1
      %p84 = por %p82, %p83
      %p86 = scmp.ne.s32.totalorder %s71, %s85
      %p87 = scmp.eq.s32.totalorder %s28, 0
      %p88 = por %p86, %p87
      %s90 = sadd.s32 %s89, 1
      %p93 = scmp.eq.s32.totalorder %s22, 1
      %p94 = scmp.ne.s32.totalorder %s89, %s91
      %p95 = scmp.eq.s32.totalorder %s22, 0
      %p96 = por %p94, %p95
      %p97 = scmp.ne.s32.totalorder %s89, %s91
      %p98 = scmp.eq.s32.totalorder %s27, 1
      %p99 = por %p97, %p98
      %p100 = scmp.ne.s32.totalorder %s91, %s92
      %p101 = scmp.eq.s32.totalorder %s27, 0
      %p102 = por %p100, %p101
      %p103 = scmp.ne.s32.totalorder %s91, %s92
      %p104 = scmp.eq.s32.totalorder %s28, 1
      %p105 = por %p103, %p104
      %p107 = scmp.ne.s32.totalorder %s92, %s106
      %p108 = scmp.eq.s32.totalorder %s28, 0
      %p109 = por %p107, %p108
      %s110 = ssub.s32 %s30, %s37
      %p111 = scmp.eq.s32.totalorder %s110, 0
      %s113 = sadd.s32 %s112, 1
      %s114 = scalar_select %p111, %s112, %s113
      %p117 = pneg %p111
      %p118 = scmp.eq.s32.totalorder %s22, 1
      %p119 = por %p117, %p118
      %p120 = scmp.ne.s32.totalorder %s112, %s115
      %p121 = scmp.eq.s32.totalorder %s22, 0
      %p122 = por %p120, %p121
      %p123 = scmp.ne.s32.totalorder %s112, %s115
      %p124 = scmp.eq.s32.totalorder %s27, 1
      %p125 = por %p123, %p124
      %p126 = scmp.ne.s32.totalorder %s115, %s116
      %p127 = scmp.eq.s32.totalorder %s27, 0
      %p128 = por %p126, %p127
      %p129 = scmp.ne.s32.totalorder %s115, %s116
      %p130 = scmp.eq.s32.totalorder %s28, 1
      %p131 = por %p129, %p130
      %p133 = scmp.ne.s32.totalorder %s116, %s132
      %p134 = scmp.eq.s32.totalorder %s28, 0
      %p135 = por %p133, %p134
      %s136 = ssub.s32 %s30, %s37
      %p137 = scmp.eq.s32.totalorder %s136, 0
      %s139 = sadd.s32 %s138, 1
      %s140 = scalar_select %p137, %s138, %s139
      %p143 = pneg %p137
      %p144 = scmp.eq.s32.totalorder %s22, 1
      %p145 = por %p143, %p144
      %p146 = scmp.ne.s32.totalorder %s138, %s141
      %p147 = scmp.eq.s32.totalorder %s22, 0
      %p148 = por %p146, %p147
      %p149 = scmp.ne.s32.totalorder %s138, %s141
      %p150 = scmp.eq.s32.totalorder %s27, 1
      %p151 = por %p149, %p150
      %p152 = scmp.ne.s32.totalorder %s141, %s142
      %p153 = scmp.eq.s32.totalorder %s27, 0
      %p154 = por %p152, %p153
      %p155 = scmp.ne.s32.totalorder %s141, %s142
      %p156 = scmp.eq.s32.totalorder %s28, 1
      %p157 = por %p155, %p156
      %p159 = scmp.ne.s32.totalorder %s142, %s158
      %p160 = scmp.eq.s32.totalorder %s28, 0
      %p161 = por %p159, %p160
      %s162 = ssub.s32 %s30, %s37
      %p163 = scmp.eq.s32.totalorder %s162, 0
      %s165 = sadd.s32 %s164, 1
      %s166 = scalar_select %p163, %s164, %s165
      %p169 = pneg %p163
      %p170 = scmp.eq.s32.totalorder %s22, 1
      %p171 = por %p169, %p170
      %p172 = scmp.ne.s32.totalorder %s164, %s167
      %p173 = scmp.eq.s32.totalorder %s22, 0
      %p174 = por %p172, %p173
      %p175 = scmp.ne.s32.totalorder %s164, %s167
      %p176 = scmp.eq.s32.totalorder %s27, 1
      %p177 = por %p175, %p176
      %p178 = scmp.ne.s32.totalorder %s167, %s168
      %p179 = scmp.eq.s32.totalorder %s27, 0
      %p180 = por %p178, %p179
      %p181 = scmp.ne.s32.totalorder %s167, %s168
      %p182 = scmp.eq.s32.totalorder %s28, 1
      %p183 = por %p181, %p182
      %p185 = scmp.ne.s32.totalorder %s168, %s184
      %p186 = scmp.eq.s32.totalorder %s28, 0
      %p187 = por %p185, %p186
      %s188 = ssub.s32 %s30, %s37
      %p189 = scmp.eq.s32.totalorder %s188, 0
      %s191 = sadd.s32 %s190, 1
      %s192 = scalar_select %p189, %s190, %s191
      %p195 = pneg %p189
      %p196 = scmp.eq.s32.totalorder %s22, 1
      %p197 = por %p195, %p196
      %p198 = scmp.ne.s32.totalorder %s190, %s193
      %p199 = scmp.eq.s32.totalorder %s22, 0
      %p200 = por %p198, %p199
      %p201 = scmp.ne.s32.totalorder %s190, %s193
      %p202 = scmp.eq.s32.totalorder %s27, 1
      %p203 = por %p201, %p202
      %p204 = scmp.ne.s32.totalorder %s193, %s194
      %p205 = scmp.eq.s32.totalorder %s27, 0
      %p206 = por %p204, %p205
      %p207 = scmp.ne.s32.totalorder %s193, %s194
      %p208 = scmp.eq.s32.totalorder %s28, 1
      %p209 = por %p207, %p208
      %p211 = scmp.ne.s32.totalorder %s194, %s210
      %p212 = scmp.eq.s32.totalorder %s28, 0
      %p213 = por %p211, %p212
      %s214 = ssub.s32 %s30, %s37
      %p215 = scmp.eq.s32.totalorder %s214, 0
      %s217 = sadd.s32 %s216, 1
      %s218 = scalar_select %p215, %s216, %s217
      %p221 = pneg %p215
      %p222 = scmp.eq.s32.totalorder %s22, 1
      %p223 = por %p221, %p222
      %p224 = scmp.ne.s32.totalorder %s216, %s219
      %p225 = scmp.eq.s32.totalorder %s22, 0
      %p226 = por %p224, %p225
      %p227 = scmp.ne.s32.totalorder %s216, %s219
      %p228 = scmp.eq.s32.totalorder %s27, 1
      %p229 = por %p227, %p228
      %p230 = scmp.ne.s32.totalorder %s219, %s220
      %p231 = scmp.eq.s32.totalorder %s27, 0
      %p232 = por %p230, %p231
      %p233 = scmp.ne.s32.totalorder %s219, %s220
      %p234 = scmp.eq.s32.totalorder %s28, 1
      %p235 = por %p233, %p234
      %p237 = scmp.ne.s32.totalorder %s220, %s236
      %p238 = scmp.eq.s32.totalorder %s28, 0
      %p239 = por %p237, %p238
      %s240 = ssub.s32 %s30, %s37
      %p241 = scmp.eq.s32.totalorder %s240, 0
      %s243 = sadd.s32 %s242, 1
      %s244 = scalar_select %p241, %s242, %s243
      %p247 = pneg %p241
      %p248 = scmp.eq.s32.totalorder %s22, 1
      %p249 = por %p247, %p248
      %p250 = scmp.ne.s32.totalorder %s242, %s245
      %p251 = scmp.eq.s32.totalorder %s22, 0
      %p252 = por %p250, %p251
      %p253 = scmp.ne.s32.totalorder %s242, %s245
      %p254 = scmp.eq.s32.totalorder %s27, 1
      %p255 = por %p253, %p254
      %p256 = scmp.ne.s32.totalorder %s245, %s246
      %p257 = scmp.eq.s32.totalorder %s27, 0
      %p258 = por %p256, %p257
      %p259 = scmp.ne.s32.totalorder %s245, %s246
      %p260 = scmp.eq.s32.totalorder %s28, 1
      %p261 = por %p259, %p260
      %p263 = scmp.ne.s32.totalorder %s246, %s262
      %p264 = scmp.eq.s32.totalorder %s28, 0
      %p265 = por %p263, %p264
      %s266 = ssub.s32 %s30, %s37
      %p267 = scmp.eq.s32.totalorder %s266, 0
      %s269 = sadd.s32 %s268, 1
      %s270 = scalar_select %p267, %s268, %s269
      %p273 = pneg %p267
      %p274 = scmp.eq.s32.totalorder %s22, 1
      %p275 = por %p273, %p274
      %p276 = scmp.ne.s32.totalorder %s268, %s271
      %p277 = scmp.eq.s32.totalorder %s22, 0
      %p278 = por %p276, %p277
      %p279 = scmp.ne.s32.totalorder %s268, %s271
      %p280 = scmp.eq.s32.totalorder %s27, 1
      %p281 = por %p279, %p280
      %p282 = scmp.ne.s32.totalorder %s271, %s272
      %p283 = scmp.eq.s32.totalorder %s27, 0
      %p284 = por %p282, %p283
      %p285 = scmp.ne.s32.totalorder %s271, %s272
      %p286 = scmp.eq.s32.totalorder %s28, 1
      %p287 = por %p285, %p286
      %p289 = scmp.ne.s32.totalorder %s272, %s288
      %p290 = scmp.eq.s32.totalorder %s28, 0
      %p291 = por %p289, %p290
      %s292 = ssub.s32 %s30, %s37
      %p293 = scmp.eq.s32.totalorder %s292, 0
      %s295 = sadd.s32 %s294, 1
      %s296 = scalar_select %p293, %s294, %s295
      %p299 = pneg %p293
      %p300 = scmp.eq.s32.totalorder %s22, 1
      %p301 = por %p299, %p300
      %p302 = scmp.ne.s32.totalorder %s294, %s297
      %p303 = scmp.eq.s32.totalorder %s22, 0
      %p304 = por %p302, %p303
      %p305 = scmp.ne.s32.totalorder %s294, %s297
      %p306 = scmp.eq.s32.totalorder %s27, 1
      %p307 = por %p305, %p306
      %p308 = scmp.ne.s32.totalorder %s297, %s298
      %p309 = scmp.eq.s32.totalorder %s27, 0
      %p310 = por %p308, %p309
      %p311 = scmp.ne.s32.totalorder %s297, %s298
      %p312 = scmp.eq.s32.totalorder %s28, 1
      %p313 = por %p311, %p312
      %p315 = scmp.ne.s32.totalorder %s298, %s314
      %p316 = scmp.eq.s32.totalorder %s28, 0
      %p317 = por %p315, %p316
      %s318 = ssub.s32 %s30, %s37
      %p319 = scmp.eq.s32.totalorder %s318, 0
      %s321 = sadd.s32 %s320, 1
      %s322 = scalar_select %p319, %s320, %s321
      %p325 = pneg %p319
      %p326 = scmp.eq.s32.totalorder %s22, 1
      %p327 = por %p325, %p326
      %p328 = scmp.ne.s32.totalorder %s320, %s323
      %p329 = scmp.eq.s32.totalorder %s22, 0
      %p330 = por %p328, %p329
      %p331 = scmp.ne.s32.totalorder %s320, %s323
      %p332 = scmp.eq.s32.totalorder %s27, 1
      %p333 = por %p331, %p332
      %p334 = scmp.ne.s32.totalorder %s323, %s324
      %p335 = scmp.eq.s32.totalorder %s27, 0
      %p336 = por %p334, %p335
      %p337 = scmp.ne.s32.totalorder %s323, %s324
      %p338 = scmp.eq.s32.totalorder %s28, 1
      %p339 = por %p337, %p338
      %p341 = scmp.ne.s32.totalorder %s324, %s340
      %p342 = scmp.eq.s32.totalorder %s28, 0
      %p343 = por %p341, %p342
      %s344 = ssub.s32 %s30, %s37
      %p345 = scmp.eq.s32.totalorder %s344, 0
      %s347 = sadd.s32 %s346, 1
      %s348 = scalar_select %p345, %s346, %s347
      %p351 = pneg %p345
      %p352 = scmp.eq.s32.totalorder %s22, 1
      %p353 = por %p351, %p352
      %p354 = scmp.ne.s32.totalorder %s346, %s349
      %p355 = scmp.eq.s32.totalorder %s22, 0
      %p356 = por %p354, %p355
      %p357 = scmp.ne.s32.totalorder %s346, %s349
      %p358 = scmp.eq.s32.totalorder %s27, 1
      %p359 = por %p357, %p358
      %p360 = scmp.ne.s32.totalorder %s349, %s350
      %p361 = scmp.eq.s32.totalorder %s27, 0
      %p362 = por %p360, %p361
      %p363 = scmp.ne.s32.totalorder %s349, %s350
      %p364 = scmp.eq.s32.totalorder %s28, 1
      %p365 = por %p363, %p364
      %p367 = scmp.ne.s32.totalorder %s350, %s366
      %p368 = scmp.eq.s32.totalorder %s28, 0
      %p369 = por %p367, %p368
      %s371 = sadd.s32 %s370, 1
      %p374 = scmp.eq.s32.totalorder %s22, 1
      %p375 = scmp.ne.s32.totalorder %s370, %s372
      %p376 = scmp.eq.s32.totalorder %s22, 0
      %p377 = por %p375, %p376
      %p378 = scmp.ne.s32.totalorder %s370, %s372
      %p379 = scmp.eq.s32.totalorder %s27, 1
      %p380 = por %p378, %p379
      %p381 = scmp.ne.s32.totalorder %s372, %s373
      %p382 = scmp.eq.s32.totalorder %s27, 0
      %p383 = por %p381, %p382
      %p384 = scmp.ne.s32.totalorder %s372, %s373
      %p385 = scmp.eq.s32.totalorder %s28, 1
      %p386 = por %p384, %p385
      %p388 = scmp.ne.s32.totalorder %s373, %s387
      %p389 = scmp.eq.s32.totalorder %s28, 0
      %p390 = por %p388, %p389
      %s392 = sadd.s32 %s391, 1
      %p395 = scmp.eq.s32.totalorder %s22, 1
      %p396 = scmp.ne.s32.totalorder %s391, %s393
      %p397 = scmp.eq.s32.totalorder %s22, 0
      %p398 = por %p396, %p397
      %p399 = scmp.ne.s32.totalorder %s391, %s393
      %p400 = scmp.eq.s32.totalorder %s27, 1
      %p401 = por %p399, %p400
      %p402 = scmp.ne.s32.totalorder %s393, %s394
      %p403 = scmp.eq.s32.totalorder %s27, 0
      %p404 = por %p402, %p403
      %p405 = scmp.ne.s32.totalorder %s393, %s394
      %p406 = scmp.eq.s32.totalorder %s28, 1
      %p407 = por %p405, %p406
      %p409 = scmp.ne.s32.totalorder %s394, %s408
      %p410 = scmp.eq.s32.totalorder %s28, 0
      %p411 = por %p409, %p410
      %s412 = ssub.s32 %s29, %s41
      %p413 = scmp.eq.s32.totalorder %s412, 0
      %s415 = sadd.s32 %s414, 1
      %s416 = scalar_select %p413, %s414, %s415
      %p419 = pneg %p413
      %p420 = scmp.eq.s32.totalorder %s22, 1
      %p421 = por %p419, %p420
      %p422 = scmp.ne.s32.totalorder %s414, %s417
      %p423 = scmp.eq.s32.totalorder %s22, 0
      %p424 = por %p422, %p423
      %p425 = scmp.ne.s32.totalorder %s414, %s417
      %p426 = scmp.eq.s32.totalorder %s27, 1
      %p427 = por %p425, %p426
      %p428 = scmp.ne.s32.totalorder %s417, %s418
      %p429 = scmp.eq.s32.totalorder %s27, 0
      %p430 = por %p428, %p429
      %p431 = scmp.ne.s32.totalorder %s417, %s418
      %p432 = scmp.eq.s32.totalorder %s28, 1
      %p433 = por %p431, %p432
      %p435 = scmp.ne.s32.totalorder %s418, %s434
      %p436 = scmp.eq.s32.totalorder %s28, 0
      %p437 = por %p435, %p436
      %p438 = scmp.le.s32.totalorder 1, %s22
      %p439 = scmp.lt.s32.totalorder %s22, 3
      %p440 = pnand %p438, %p439
      %p441 = pneg %p440
      // Predicated region
      $region9: #{tpu_custom_call.1} parent=5 // pred_check
        _
      $region10: #{tpu_custom_call.1} parent=5 // pred_check_branch
        %443 = sbr.rel (%p440) target = $region12
      $region11: #{tpu_custom_call.1} parent=5 // pred_region
        %s444 = ssub.s32 %s22, 1
        // Predicated region
        $region13: #{tpu_custom_call.1} parent=11 // pred_check
          %p445 = pneg %p60
        $region14: #{tpu_custom_call.1} parent=11 // pred_check_branch
          %447 = sbr.rel (%p445) target = $region16
        $region15: #{tpu_custom_call.1} parent=11 // pred_region
          %s448 = smul.u32 2, %s31
          %p449 = scmp.lt.s32.totalorder %s448, 1
          %s450 = scalar_select %p449, %s448, 1
          %s451 = smul.addr %s450, 2
          %s452 = smul.addr %s451, 8
          %s453 = scalar_lea.vmem %s0, %s452
          %s454 = smul.u32 2, %s31
        $region16: #{tpu_custom_call.1} parent=11 // pred_fallthru
          _
        // Predicated region
        $region17: #{tpu_custom_call.1} parent=11 // pred_check
          %p455 = pneg %p81
        $region18: #{tpu_custom_call.1} parent=11 // pred_check_branch
          %457 = sbr.rel (%p455) target = $region20
        $region19: #{tpu_custom_call.1} parent=11 // pred_region
          _
        $region20: #{tpu_custom_call.1} parent=11 // pred_fallthru
          _
        // Predicated region
        $region21: #{tpu_custom_call.1} parent=11 // pred_check
          %p458 = pneg %p102
        $region22: #{tpu_custom_call.1} parent=11 // pred_check_branch
          %460 = sbr.rel (%p458) target = $region24
        $region23: #{tpu_custom_call.1} parent=11 // pred_region
          _
        $region24: #{tpu_custom_call.1} parent=11 // pred_fallthru
          _
        // Predicated region
        $region25: #{tpu_custom_call.1} parent=11 // pred_check
          %p461 = pneg %p383
        $region26: #{tpu_custom_call.1} parent=11 // pred_check_branch
          %463 = sbr.rel (%p461) target = $region28
        $region27: #{tpu_custom_call.1} parent=11 // pred_region
          _
        $region28: #{tpu_custom_call.1} parent=11 // pred_fallthru
          _
        // Predicated region
        $region29: #{tpu_custom_call.1} parent=11 // pred_check
          %p464 = pneg %p404
        $region30: #{tpu_custom_call.1} parent=11 // pred_check_branch
          %466 = sbr.rel (%p464) target = $region32
        $region31: #{tpu_custom_call.1} parent=11 // pred_region
          _
        $region32: #{tpu_custom_call.1} parent=11 // pred_fallthru
          _
      $region12: #{tpu_custom_call.1} parent=5 // pred_fallthru
        _
      %p467 = scmp.lt.s32.totalorder %s22, 2
      // Predicated region
      $region33: #{tpu_custom_call.1} parent=5 // pred_check
        %p468 = pneg %p467
      $region34: #{tpu_custom_call.1} parent=5 // pred_check_branch
        %470 = sbr.rel (%p468) target = $region36
      $region35: #{tpu_custom_call.1} parent=5 // pred_region
        // Predicated region
        $region37: #{tpu_custom_call.1} parent=35 // pred_check
          %p471 = pneg %p122
        $region38: #{tpu_custom_call.1} parent=35 // pred_check_branch
          %473 = sbr.rel (%p471) target = $region40
        $region39: #{tpu_custom_call.1} parent=35 // pred_region
          %p474 = scmp.lt.s32.totalorder %s30, 1
          %s475 = scalar_select %p474, %s30, 1
          %s476 = scalar_lea.vmem %s3, %s475
        $region40: #{tpu_custom_call.1} parent=35 // pred_fallthru
          _
        // Predicated region
        $region41: #{tpu_custom_call.1} parent=35 // pred_check
          %p477 = pneg %p148
        $region42: #{tpu_custom_call.1} parent=35 // pred_check_branch
          %479 = sbr.rel (%p477) target = $region44
        $region43: #{tpu_custom_call.1} parent=35 // pred_region
          %p480 = scmp.lt.s32.totalorder %s30, 1
          %s481 = scalar_select %p480, %s30, 1
          %s482 = scalar_lea.vmem %s4, %s481
        $region44: #{tpu_custom_call.1} parent=35 // pred_fallthru
          _
        // Predicated region
        $region45: #{tpu_custom_call.1} parent=35 // pred_check
          %p483 = pneg %p174
        $region46: #{tpu_custom_call.1} parent=35 // pred_check_branch
          %485 = sbr.rel (%p483) target = $region48
        $region47: #{tpu_custom_call.1} parent=35 // pred_region
          %p486 = scmp.lt.s32.totalorder %s30, 1
          %s487 = scalar_select %p486, %s30, 1
          %s488 = smul.addr %s487, 8
          %s489 = smul.addr %s488, 8
          %s490 = scalar_lea.vmem %s5, %s489
        $region48: #{tpu_custom_call.1} parent=35 // pred_fallthru
          _
        // Predicated region
        $region49: #{tpu_custom_call.1} parent=35 // pred_check
          %p491 = pneg %p200
        $region50: #{tpu_custom_call.1} parent=35 // pred_check_branch
          %493 = sbr.rel (%p491) target = $region52
        $region51: #{tpu_custom_call.1} parent=35 // pred_region
          %p494 = scmp.lt.s32.totalorder %s30, 1
          %s495 = scalar_select %p494, %s30, 1
          %s496 = smul.addr %s495, 8
          %s497 = smul.addr %s496, 8
          %s498 = scalar_lea.vmem %s6, %s497
        $region52: #{tpu_custom_call.1} parent=35 // pred_fallthru
          _
        // Predicated region
        $region53: #{tpu_custom_call.1} parent=35 // pred_check
          %p499 = pneg %p226
        $region54: #{tpu_custom_call.1} parent=35 // pred_check_branch
          %501 = sbr.rel (%p499) target = $region56
        $region55: #{tpu_custom_call.1} parent=35 // pred_region
          %p502 = scmp.lt.s32.totalorder %s30, 1
          %s503 = scalar_select %p502, %s30, 1
          %s504 = smul.addr %s503, 2
          %s505 = smul.addr %s504, 8
          %s506 = scalar_lea.vmem %s7, %s505
        $region56: #{tpu_custom_call.1} parent=35 // pred_fallthru
          _
        // Predicated region
        $region57: #{tpu_custom_call.1} parent=35 // pred_check
          %p507 = pneg %p252
        $region58: #{tpu_custom_call.1} parent=35 // pred_check_branch
          %509 = sbr.rel (%p507) target = $region60
        $region59: #{tpu_custom_call.1} parent=35 // pred_region
          %p510 = scmp.lt.s32.totalorder %s30, 1
          %s511 = scalar_select %p510, %s30, 1
          %s512 = smul.addr %s511, 2
          %s513 = smul.addr %s512, 8
          %s514 = scalar_lea.vmem %s8, %s513
        $region60: #{tpu_custom_call.1} parent=35 // pred_fallthru
          _
        // Predicated region
        $region61: #{tpu_custom_call.1} parent=35 // pred_check
          %p515 = pneg %p278
        $region62: #{tpu_custom_call.1} parent=35 // pred_check_branch
          %517 = sbr.rel (%p515) target = $region64
        $region63: #{tpu_custom_call.1} parent=35 // pred_region
          %p518 = scmp.lt.s32.totalorder %s30, 1
          %s519 = scalar_select %p518, %s30, 1
          %s520 = smul.addr %s519, 4
          %s521 = smul.addr %s520, 8
          %s522 = scalar_lea.vmem %s9, %s521
        $region64: #{tpu_custom_call.1} parent=35 // pred_fallthru
          _
        // Predicated region
        $region65: #{tpu_custom_call.1} parent=35 // pred_check
          %p523 = pneg %p304
        $region66: #{tpu_custom_call.1} parent=35 // pred_check_branch
          %525 = sbr.rel (%p523) target = $region68
        $region67: #{tpu_custom_call.1} parent=35 // pred_region
          %p526 = scmp.lt.s32.totalorder %s30, 1
          %s527 = scalar_select %p526, %s30, 1
          %s528 = scalar_lea.vmem %s10, %s527
        $region68: #{tpu_custom_call.1} parent=35 // pred_fallthru
          _
        // Predicated region
        $region69: #{tpu_custom_call.1} parent=35 // pred_check
          %p529 = pneg %p330
        $region70: #{tpu_custom_call.1} parent=35 // pred_check_branch
          %531 = sbr.rel (%p529) target = $region72
        $region71: #{tpu_custom_call.1} parent=35 // pred_region
          %p532 = scmp.lt.s32.totalorder %s30, 1
          %s533 = scalar_select %p532, %s30, 1
          %s534 = smul.addr %s533, 2
          %s535 = smul.addr %s534, 8
          %s536 = scalar_lea.vmem %s11, %s535
        $region72: #{tpu_custom_call.1} parent=35 // pred_fallthru
          _
        // Predicated region
        $region73: #{tpu_custom_call.1} parent=35 // pred_check
          %p537 = pneg %p356
        $region74: #{tpu_custom_call.1} parent=35 // pred_check_branch
          %539 = sbr.rel (%p537) target = $region76
        $region75: #{tpu_custom_call.1} parent=35 // pred_region
          %p540 = scmp.lt.s32.totalorder %s30, 1
          %s541 = scalar_select %p540, %s30, 1
          %s542 = scalar_lea.vmem %s12, %s541
        $region76: #{tpu_custom_call.1} parent=35 // pred_fallthru
          _
      $region36: #{tpu_custom_call.1} parent=5 // pred_fallthru
        _
      %p543 = scmp.le.s32.totalorder 1, %s22
      %p544 = scmp.lt.s32.totalorder %s22, 3
      %p545 = pnand %p543, %p544
      %p546 = pneg %p545
      // Predicated region
      $region77: #{tpu_custom_call.1} parent=5 // pred_check
        _
      $region78: #{tpu_custom_call.1} parent=5 // pred_check_branch
        %548 = sbr.rel (%p545) target = $region80
      $region79: #{tpu_custom_call.1} parent=5 // pred_region
        %s549 = ssub.s32 %s22, 1
        %s550 = smul.u32 2, %s31
        %p551 = scmp.lt.s32.totalorder %s550, 1
        %s552 = scalar_select %p551, %s550, 1
        %s553 = smul.addr %s552, 2
        %s554 = smul.addr %s553, 8
        %s555 = scalar_lea.vmem %s0, %s554
        %p556 = pneg %p60
        %p557 = pneg %p57
        %p558 = pneg %p81
        %p559 = pneg %p78
        %p560 = pneg %p102
        %p561 = pneg %p99
        %p562 = scmp.lt.s32.totalorder %s32, 1
        %s563 = scalar_select %p562, %s32, 1
        %s564 = scalar_lea.vmem %s3, %s563
        %p565 = pneg %p128
        %p566 = pneg %p125
        %p567 = scmp.lt.s32.totalorder %s32, 1
        %s568 = scalar_select %p567, %s32, 1
        %s569 = scalar_lea.vmem %s4, %s568
        %p570 = pneg %p154
        %p571 = pneg %p151
        %p572 = scmp.lt.s32.totalorder %s32, 1
        %s573 = scalar_select %p572, %s32, 1
        %s574 = smul.addr %s573, 8
        %s575 = smul.addr %s574, 8
        %s576 = scalar_lea.vmem %s5, %s575
        %p577 = pneg %p180
        %p578 = pneg %p177
        %p579 = scmp.lt.s32.totalorder %s32, 1
        %s580 = scalar_select %p579, %s32, 1
        %s581 = smul.addr %s580, 8
        %s582 = smul.addr %s581, 8
        %s583 = scalar_lea.vmem %s6, %s582
        %p584 = pneg %p206
        %p585 = pneg %p203
        %p586 = scmp.lt.s32.totalorder %s32, 1
        %s587 = scalar_select %p586, %s32, 1
        %s588 = smul.addr %s587, 2
        %s589 = smul.addr %s588, 8
        %s590 = scalar_lea.vmem %s7, %s589
        %p591 = pneg %p232
        %p592 = pneg %p229
        %p593 = scmp.lt.s32.totalorder %s32, 1
        %s594 = scalar_select %p593, %s32, 1
        %s595 = smul.addr %s594, 2
        %s596 = smul.addr %s595, 8
        %s597 = scalar_lea.vmem %s8, %s596
        %p598 = pneg %p258
        %p599 = pneg %p255
        %p600 = scmp.lt.s32.totalorder %s32, 1
        %s601 = scalar_select %p600, %s32, 1
        %s602 = smul.addr %s601, 4
        %s603 = smul.addr %s602, 8
        %s604 = scalar_lea.vmem %s9, %s603
        %p605 = pneg %p284
        %p606 = pneg %p281
        %p607 = scmp.lt.s32.totalorder %s32, 1
        %s608 = scalar_select %p607, %s32, 1
        %s609 = scalar_lea.vmem %s10, %s608
        %p610 = pneg %p310
        %p611 = pneg %p307
        %p612 = scmp.lt.s32.totalorder %s32, 1
        %s613 = scalar_select %p612, %s32, 1
        %s614 = smul.addr %s613, 2
        %s615 = smul.addr %s614, 8
        %s616 = scalar_lea.vmem %s11, %s615
        %p617 = pneg %p336
        %p618 = pneg %p333
        %p619 = scmp.lt.s32.totalorder %s32, 1
        %s620 = scalar_select %p619, %s32, 1
        %s621 = scalar_lea.vmem %s12, %s620
        %p622 = pneg %p362
        %p623 = pneg %p359
        %p624 = pneg %p383
        %p625 = pneg %p380
        %p626 = pneg %p404
        %p627 = pneg %p401
        %p628 = pneg %p430
        %p629 = pneg %p427
        %s630 = smul.u32 2, %s31
        %p631 = scmp.lt.s32.totalorder %s630, 1
        %s632 = scalar_select %p631, %s630, 1
        %s633 = smul.addr %s632, 2
        %s634 = smul.addr %s633, 8
        %s635 = scalar_lea.vmem %s0, %s634
        %s636 = smul.u32 2, %s31
        %p637 = scmp.lt.s32.totalorder %s32, 1
        %s638 = scalar_select %p637, %s32, 1
        %s639 = scalar_lea.vmem %s3, %s638
        %p640 = scmp.lt.s32.totalorder %s32, 1
        %s641 = scalar_select %p640, %s32, 1
        %s642 = scalar_lea.vmem %s4, %s641
        %p643 = scmp.lt.s32.totalorder %s32, 1
        %s644 = scalar_select %p643, %s32, 1
        %s645 = smul.addr %s644, 8
        %s646 = smul.addr %s645, 8
        %s647 = scalar_lea.vmem %s5, %s646
        %p648 = scmp.lt.s32.totalorder %s32, 1
        %s649 = scalar_select %p648, %s32, 1
        %s650 = smul.addr %s649, 8
        %s651 = smul.addr %s650, 8
        %s652 = scalar_lea.vmem %s6, %s651
        %p653 = scmp.lt.s32.totalorder %s32, 1
        %s654 = scalar_select %p653, %s32, 1
        %s655 = smul.addr %s654, 2
        %s656 = smul.addr %s655, 8
        %s657 = scalar_lea.vmem %s7, %s656
        %p658 = scmp.lt.s32.totalorder %s32, 1
        %s659 = scalar_select %p658, %s32, 1
        %s660 = smul.addr %s659, 2
        %s661 = smul.addr %s660, 8
        %s662 = scalar_lea.vmem %s8, %s661
        %p663 = scmp.lt.s32.totalorder %s32, 1
        %s664 = scalar_select %p663, %s32, 1
        %s665 = smul.addr %s664, 4
        %s666 = smul.addr %s665, 8
        %s667 = scalar_lea.vmem %s9, %s666
        %p668 = scmp.lt.s32.totalorder %s32, 1
        %s669 = scalar_select %p668, %s32, 1
        %s670 = scalar_lea.vmem %s10, %s669
        %p671 = scmp.lt.s32.totalorder %s32, 1
        %s672 = scalar_select %p671, %s32, 1
        %s673 = smul.addr %s672, 2
        %s674 = smul.addr %s673, 8
        %s675 = scalar_lea.vmem %s11, %s674
        %p676 = scmp.lt.s32.totalorder %s32, 1
        %s677 = scalar_select %p676, %s32, 1
        %s678 = scalar_lea.vmem %s12, %s677
        %s679 = smul.u32 2, %s31
        %p680 = scmp.eq.s32.totalorder %s32, 0
        // Predicated region
        $region81: #{tpu_custom_call.1} parent=79 // pred_check
          %p681 = pneg %p680
        $region82: #{tpu_custom_call.1} parent=79 // pred_check_branch
          %683 = sbr.rel (%p681) target = $region84
        $region83: #{tpu_custom_call.1} parent=79 // pred_region
          %v684 = vld [vmem:[%s635] sm:$0xff]
          %v685 = vld [vmem:[%s635 + $0x8] sm:$0xff]
          %v686 = vld [vmem:[%s635 + $0x10] sm:$0xff]
          %v687 = vld [vmem:[%s635 + $0x18] sm:$0xff]
          %v688 = vld [vmem:[%s1] sm:$0xff]
          %v689 = vld [vmem:[%s1 + $0x8] sm:$0xff]
          %v690 = vld [vmem:[%s1 + $0x10] sm:$0xff]
          %v691 = vld [vmem:[%s1 + $0x18] sm:$0xff]
          %v692 = vld [vmem:[%s1 + $0x20] sm:$0xff]
          %v693 = vld [vmem:[%s1 + $0x28] sm:$0xff]
          %v694 = vld [vmem:[%s2] sm:$0x1]
          %v696 = vlaneseq
          %v697 = vshrl.u32 %v696, 7
          %v698 = vsub.s32 0, %v697
          %v699 = vrot.slane %v694, %v698
          %vm701 = vcmask 392192
          %v703 = vsel %vm701, %v684, 0
          %v706 = vsel %vm701, %v685, 0
          %v709 = vsel %vm701, %v686, 0
          %v712 = vsel %vm701, %v687, 0
          %714 = vmatprep.subr.mxu0 0.0
          %715 = vmatpush1.msra.mxu0 %v688
          %716 = vmatprep.subr.mxu0 0.0
          %717 = vmatpush1.msra.mxu0 %v689
          %718 = vmatprep.subr.mxu0 0.0
          %719 = vmatpush1.msra.mxu0 %v690
          %720 = vmatprep.subr.mxu0 0.0
          %721 = vmatpush1.msra.mxu0 %v691
          %722 = vmatprep.subr.mxu0 0.0
          %723 = vmatpush1.msra.mxu0 %v692
          %724 = vmatprep.subr.mxu0 0.0
          %725 = vmatpush1.msra.mxu0 %v693
          %726 = vmatprep.subr.mxu0 0.0
          %727 = vmatpush1.msra.mxu0 0.0
          %728 = vmatprep.subr.mxu0 0.0
          %729 = vmatpush1.msra.mxu0 0.0
          %730 = vmatprep.subr.mxu0 0.0
          %731 = vmatpush1.msra.mxu0 0.0
          %732 = vmatprep.subr.mxu0 0.0
          %733 = vmatpush1.msra.mxu0 0.0
          %734 = vmatprep.subr.mxu0 0.0
          %735 = vmatpush1.msra.mxu0 0.0
          %736 = vmatprep.subr.mxu0 0.0
          %737 = vmatpush1.msra.mxu0 0.0
          %738 = vmatprep.subr.mxu0 0.0
          %739 = vmatpush1.msra.mxu0 0.0
          %740 = vmatprep.subr.mxu0 0.0
          %741 = vmatpush1.msra.mxu0 0.0
          %742 = vmatprep.subr.mxu0 0.0
          %743 = vmatpush1.msra.mxu0 0.0
          %744 = vmatprep.subr.mxu0 0.0
          %745 = vmatpush1.msra.mxu0 0.0
          %746 = vmatprep.subr.mxu0 0.0
          %747 = vmatpush1.msra.mxu0 0.0
          %748 = vmatprep.subr.mxu0 0.0
          %749 = vmatpush1.msra.mxu0 0.0
          %750 = vmatprep.subr.mxu0 0.0
          %751 = vmatpush1.msra.mxu0 0.0
          %752 = vmatprep.subr.mxu0 0.0
          %753 = vmatpush1.msra.mxu0 0.0
          %754 = vmatprep.subr.mxu0 0.0
          %755 = vmatpush1.msra.mxu0 0.0
          %756 = vmatprep.subr.mxu0 0.0
          %757 = vmatpush1.msra.mxu0 0.0
          %758 = vmatprep.subr.mxu0 0.0
          %759 = vmatpush1.msra.mxu0 0.0
          %760 = vmatprep.subr.mxu0 0.0
          %761 = vmatpush1.msra.mxu0 0.0
          %762 = vmatprep.subr.mxu0 0.0
          %763 = vmatpush1.msra.mxu0 0.0
          %764 = vmatprep.subr.mxu0 0.0
          %765 = vmatpush1.msra.mxu0 0.0
          %766 = vmatprep.subr.mxu0 0.0
          %767 = vmatpush1.msra.mxu0 0.0
          %768 = vmatprep.subr.mxu0 0.0
          %769 = vmatpush1.msra.mxu0 0.0
          %770 = vmatprep.subr.mxu0 0.0
          %771 = vmatpush1.msra.mxu0 0.0
          %772 = vmatprep.subr.mxu0 0.0
          %773 = vmatpush1.msra.mxu0 0.0
          %774 = vmatprep.subr.mxu0 0.0
          %775 = vmatpush1.msra.mxu0 0.0
          %776 = vmatprep.subr.mxu0 0.0
          %777 = vmatpush1.msra.mxu0 0.0
          %778 = vmatprep.mubr.f32.mxu0 0.0
          %779 = vmatmul.mubr.f32.gmra.mrb[0].mxu0 %v703
          %v780 = vpop.f32.mrb[0].mxu0
          %v781 = vadd.f32 %v699, %v780
          %v782 = vpop.f32.mrb[0].mxu0
          %783 = vmatprep.mubr.f32.mxu0 0.0
          %784 = vmatmul.mubr.f32.gmra.mrb[0].mxu0 %v706
          %v785 = vpop.f32.mrb[0].mxu0
          %v786 = vadd.f32 %v699, %v785
          %v787 = vpop.f32.mrb[0].mxu0
          %788 = vmatprep.mubr.f32.mxu0 0.0
          %789 = vmatmul.mubr.f32.gmra.mrb[0].mxu0 %v709
          %v790 = vpop.f32.mrb[0].mxu0
          %v791 = vadd.f32 %v699, %v790
          %v792 = vpop.f32.mrb[0].mxu0
          %793 = vmatprep.mubr.f32.mxu0 0.0
          %794 = vmatmul.mubr.f32.gmra.mrb[0].mxu0 %v712
          %v795 = vpop.f32.mrb[0].mxu0
          %v796 = vadd.f32 %v699, %v795
          %v797 = vpop.f32.mrb[0].mxu0
          %798 = vdwg.mxu0
          %vm799 = vcmask 261120
          %800 = vst.msk [vmem:[#allocation2] sm:$0xff] %vm799, %v781
          %801 = vst.msk [vmem:[#allocation2 + $0x8] sm:$0xff] %vm799, %v786
          %802 = vst.msk [vmem:[#allocation2 + $0x10] sm:$0xff] %vm799, %v791
          %803 = vst.msk [vmem:[#allocation2 + $0x18] sm:$0xff] %vm799, %v796
        $region84: #{tpu_custom_call.1} parent=79 // pred_fallthru
          _
        %v804 = vld [vmem:[#allocation2] sm:$0xff]
        %v805 = vld [vmem:[#allocation2 + $0x8] sm:$0xff]
        %v806 = vld [vmem:[#allocation2 + $0x10] sm:$0xff]
        %v807 = vld [vmem:[#allocation2 + $0x18] sm:$0xff]
        %v808 = vld [vmem:[%s639] sm:$0x1]
        %v809 = vld [vmem:[%s642] sm:$0x1]
        %vm810 = vcmask 261120
        %v811 = vsel %vm810, %v804, 0.0
        %812 = vadd.xlane.f32.xlu0 %v811
        %v813 = vpop.xlane.xlu0 %812
        %v814 = vsel %vm810, %v805, 0.0
        %815 = vadd.xlane.f32.xlu0 %v814
        %v816 = vpop.xlane.xlu0 %815
        %v817 = vsel %vm810, %v806, 0.0
        %818 = vadd.xlane.f32.xlu0 %v817
        %v819 = vpop.xlane.xlu0 %818
        %v820 = vsel %vm810, %v807, 0.0
        %821 = vadd.xlane.f32.xlu0 %v820
        %v822 = vpop.xlane.xlu0 %821
        %v823 = vrcp.pop 32.0
        %v824 = vmul.f32 %v813, %v823
        %v825 = vmul.f32 %v816, %v823
        %v826 = vmul.f32 %v819, %v823
        %v827 = vmul.f32 %v822, %v823
        %v828 = vsub.f32 %v804, %v824
        %v829 = vsub.f32 %v805, %v825
        %v830 = vsub.f32 %v806, %v826
        %v831 = vsub.f32 %v807, %v827
        %v832 = vmul.f32 %v828, %v828
        %v833 = vmul.f32 %v829, %v829
        %v834 = vmul.f32 %v830, %v830
        %v835 = vmul.f32 %v831, %v831
        %v836 = vsel %vm810, %v832, 0.0
        %837 = vadd.xlane.f32.xlu0 %v836
        %v838 = vpop.xlane.xlu0 %837
        %v839 = vsel %vm810, %v833, 0.0
        %840 = vadd.xlane.f32.xlu0 %v839
        %v841 = vpop.xlane.xlu0 %840
        %v842 = vsel %vm810, %v834, 0.0
        %843 = vadd.xlane.f32.xlu0 %v842
        %v844 = vpop.xlane.xlu0 %843
        %v845 = vsel %vm810, %v835, 0.0
        %846 = vadd.xlane.f32.xlu0 %v845
        %v847 = vpop.xlane.xlu0 %846
        %v848 = vmul.f32 %v838, %v823
        %v849 = vmul.f32 %v841, %v823
        %v850 = vmul.f32 %v844, %v823
        %v851 = vmul.f32 %v847, %v823
        %v852 = vadd.f32 %v848, 1e-05
        %v853 = vadd.f32 %v849, 1e-05
        %v854 = vadd.f32 %v850, 1e-05
        %v855 = vadd.f32 %v851, 1e-05
        %v856 = vrsqrt.pop %v852
        %v857 = vrsqrt.pop %v853
        %v858 = vrsqrt.pop %v854
        %v859 = vrsqrt.pop %v855
        %v860 = vmul.f32 %v828, %v856
        %v861 = vmul.f32 %v829, %v857
        %v862 = vmul.f32 %v830, %v858
        %v863 = vmul.f32 %v831, %v859
        %v865 = vlaneseq
        %v866 = vshrl.u32 %v865, 7
        %v867 = vsub.s32 0, %v866
        %v868 = vrot.slane %v808, %v867
        %v870 = vmul.f32 %v860, %v868
        %v871 = vmul.f32 %v861, %v868
        %v872 = vmul.f32 %v862, %v868
        %v873 = vmul.f32 %v863, %v868
        %v875 = vlaneseq
        %v876 = vshrl.u32 %v875, 7
        %v877 = vsub.s32 0, %v876
        %v878 = vrot.slane %v809, %v877
        %v880 = vadd.f32 %v870, %v878
        %v881 = vadd.f32 %v871, %v878
        %v882 = vadd.f32 %v872, %v878
        %v883 = vadd.f32 %v873, %v878
        %v884 = vld [vmem:[%s647] sm:$0xff]
        %v885 = vld [vmem:[%s647 + $0x8] sm:$0xff]
        %v886 = vld [vmem:[%s647 + $0x10] sm:$0xff]
        %v887 = vld [vmem:[%s647 + $0x18] sm:$0xff]
        %v888 = vld [vmem:[%s647 + $0x20] sm:$0xff]
        %v889 = vld [vmem:[%s647 + $0x28] sm:$0xff]
        %v890 = vld [vmem:[%s647 + $0x30] sm:$0xff]
        %v891 = vld [vmem:[%s647 + $0x38] sm:$0xff]
        %v892 = vld [vmem:[%s652] sm:$0xff]
        %v893 = vld [vmem:[%s652 + $0x8] sm:$0xff]
        %v894 = vld [vmem:[%s652 + $0x10] sm:$0xff]
        %v895 = vld [vmem:[%s652 + $0x18] sm:$0xff]
        %v896 = vld [vmem:[%s652 + $0x20] sm:$0xff]
        %v897 = vld [vmem:[%s652 + $0x28] sm:$0xff]
        %v898 = vld [vmem:[%s652 + $0x30] sm:$0xff]
        %v899 = vld [vmem:[%s652 + $0x38] sm:$0xff]
        %901 = vset.pattern.permute.xlu0 0
        %902 = vperm.xlu0 %901, %v892
        %v903 = vpop.permute.xlu0 %902
        %906 = vset.pattern.permute.xlu0 0
        %907 = vperm.xlu0 %906, %v893
        %v908 = vpop.permute.xlu0 %907
        %911 = vset.pattern.permute.xlu0 0
        %912 = vperm.xlu0 %911, %v894
        %v913 = vpop.permute.xlu0 %912
        %916 = vset.pattern.permute.xlu0 0
        %917 = vperm.xlu0 %916, %v895
        %v918 = vpop.permute.xlu0 %917
        %921 = vset.pattern.permute.xlu0 0
        %922 = vperm.xlu0 %921, %v896
        %v923 = vpop.permute.xlu0 %922
        %926 = vset.pattern.permute.xlu0 0
        %927 = vperm.xlu0 %926, %v897
        %v928 = vpop.permute.xlu0 %927
        %931 = vset.pattern.permute.xlu0 0
        %932 = vperm.xlu0 %931, %v898
        %v933 = vpop.permute.xlu0 %932
        %936 = vset.pattern.permute.xlu0 0
        %937 = vperm.xlu0 %936, %v899
        %v938 = vpop.permute.xlu0 %937
        %vm940 = vcmask 130048
        %v942 = vsel %vm940, %v884, 0
        %v945 = vsel %vm940, %v885, 0
        %v948 = vsel %vm940, %v886, 0
        %v951 = vsel %vm940, %v887, 0
        %v954 = vsel %vm940, %v888, 0
        %v957 = vsel %vm940, %v889, 0
        %v960 = vsel %vm940, %v890, 0
        %v963 = vsel %vm940, %v891, 0
        %965 = vmatprep.subr.mxu0 0.0
        %966 = vmatpush1.msra.mxu0 %v880
        %967 = vmatprep.subr.mxu0 0.0
        %968 = vmatpush1.msra.mxu0 %v881
        %969 = vmatprep.subr.mxu0 0.0
        %970 = vmatpush1.msra.mxu0 0.0
        %971 = vmatprep.subr.mxu0 0.0
        %972 = vmatpush1.msra.mxu0 0.0
        %973 = vmatprep.subr.mxu0 0.0
        %974 = vmatpush1.msra.mxu0 0.0
        %975 = vmatprep.subr.mxu0 0.0
        %976 = vmatpush1.msra.mxu0 0.0
        %977 = vmatprep.subr.mxu0 0.0
        %978 = vmatpush1.msra.mxu0 0.0
        %979 = vmatprep.subr.mxu0 0.0
        %980 = vmatpush1.msra.mxu0 0.0
        %981 = vmatprep.subr.mxu0 0.0
        %982 = vmatpush1.msra.mxu0 0.0
        %983 = vmatprep.subr.mxu0 0.0
        %984 = vmatpush1.msra.mxu0 0.0
        %985 = vmatprep.subr.mxu0 0.0
        %986 = vmatpush1.msra.mxu0 0.0
        %987 = vmatprep.subr.mxu0 0.0
        %988 = vmatpush1.msra.mxu0 0.0
        %989 = vmatprep.subr.mxu0 0.0
        %990 = vmatpush1.msra.mxu0 0.0
        %991 = vmatprep.subr.mxu0 0.0
        %992 = vmatpush1.msra.mxu0 0.0
        %993 = vmatprep.subr.mxu0 0.0
        %994 = vmatpush1.msra.mxu0 0.0
        %995 = vmatprep.subr.mxu0 0.0
        %996 = vmatpush1.msra.mxu0 0.0
        %997 = vmatprep.subr.mxu0 0.0
        %998 = vmatpush1.msra.mxu0 0.0
        %999 = vmatprep.subr.mxu0 0.0
        %1000 = vmatpush1.msra.mxu0 0.0
        %1001 = vmatprep.subr.mxu0 0.0
        %1002 = vmatpush1.msra.mxu0 0.0
        %1003 = vmatprep.subr.mxu0 0.0
        %1004 = vmatpush1.msra.mxu0 0.0
        %1005 = vmatprep.subr.mxu0 0.0
        %1006 = vmatpush1.msra.mxu0 0.0
        %1007 = vmatprep.subr.mxu0 0.0
        %1008 = vmatpush1.msra.mxu0 0.0
        %1009 = vmatprep.subr.mxu0 0.0
        %1010 = vmatpush1.msra.mxu0 0.0
        %1011 = vmatprep.subr.mxu0 0.0
        %1012 = vmatpush1.msra.mxu0 0.0
        %1013 = vmatprep.subr.mxu0 0.0
        %1014 = vmatpush1.msra.mxu0 0.0
        %1015 = vmatprep.subr.mxu0 0.0
        %1016 = vmatpush1.msra.mxu0 0.0
        %1017 = vmatprep.subr.mxu0 0.0
        %1018 = vmatpush1.msra.mxu0 0.0
        %1019 = vmatprep.subr.mxu0 0.0
        %1020 = vmatpush1.msra.mxu0 0.0
        %1021 = vmatprep.subr.mxu0 0.0
        %1022 = vmatpush1.msra.mxu0 0.0
        %1023 = vmatprep.subr.mxu0 0.0
        %1024 = vmatpush1.msra.mxu0 0.0
        %1025 = vmatprep.subr.mxu0 0.0
        %1026 = vmatpush1.msra.mxu0 0.0
        %1027 = vmatprep.subr.mxu0 0.0
        %1028 = vmatpush1.msra.mxu0 0.0
        %1029 = vmatprep.mubr.f32.mxu0 0.0
        %1030 = vmatmul.mubr.f32.gmra.mrb[0].mxu0 %v942
        %v1031 = vpop.f32.mrb[0].mxu0
        %v1032 = vadd.f32 %v903, %v1031
        %v1033 = vpop.f32.mrb[0].mxu0
        %1034 = vmatprep.mubr.f32.mxu0 0.0
        %1035 = vmatmul.mubr.f32.gmra.mrb[0].mxu0 %v945
        %v1036 = vpop.f32.mrb[0].mxu0
        %v1037 = vadd.f32 %v908, %v1036
        %v1038 = vpop.f32.mrb[0].mxu0
        %1039 = vmatprep.mubr.f32.mxu0 0.0
        %1040 = vmatmul.mubr.f32.gmra.mrb[0].mxu0 %v948
        %v1041 = vpop.f32.mrb[0].mxu0
        %v1042 = vadd.f32 %v913, %v1041
        %v1043 = vpop.f32.mrb[0].mxu0
        %1044 = vmatprep.mubr.f32.mxu0 0.0
        %1045 = vmatmul.mubr.f32.gmra.mrb[0].mxu0 %v951
        %v1046 = vpop.f32.mrb[0].mxu0
        %v1047 = vadd.f32 %v918, %v1046
        %v1048 = vpop.f32.mrb[0].mxu0
        %1049 = vmatprep.mubr.f32.mxu0 0.0
        %1050 = vmatmul.mubr.f32.gmra.mrb[0].mxu0 %v954
        %v1051 = vpop.f32.mrb[0].mxu0
        %v1052 = vadd.f32 %v923, %v1051
        %v1053 = vpop.f32.mrb[0].mxu0
        %1054 = vmatprep.mubr.f32.mxu0 0.0
        %1055 = vmatmul.mubr.f32.gmra.mrb[0].mxu0 %v957
        %v1056 = vpop.f32.mrb[0].mxu0
        %v1057 = vadd.f32 %v928, %v1056
        %v1058 = vpop.f32.mrb[0].mxu0
        %1059 = vmatprep.mubr.f32.mxu0 0.0
        %1060 = vmatmul.mubr.f32.gmra.mrb[0].mxu0 %v960
        %v1061 = vpop.f32.mrb[0].mxu0
        %v1062 = vadd.f32 %v933, %v1061
        %v1063 = vpop.f32.mrb[0].mxu0
        %1064 = vmatprep.mubr.f32.mxu0 0.0
        %1065 = vmatmul.mubr.f32.gmra.mrb[0].mxu0 %v963
        %v1066 = vpop.f32.mrb[0].mxu0
        %v1067 = vadd.f32 %v938, %v1066
        %v1068 = vpop.f32.mrb[0].mxu0
        %1069 = vdwg.mxu0
        %1070 = vmatprep.subr.mxu0 0.0
        %1071 = vmatpush1.msra.mxu0 %v882
        %1072 = vmatprep.subr.mxu0 0.0
        %1073 = vmatpush1.msra.mxu0 %v883
        %1074 = vmatprep.subr.mxu0 0.0
        %1075 = vmatpush1.msra.mxu0 0.0
        %1076 = vmatprep.subr.mxu0 0.0
        %1077 = vmatpush1.msra.mxu0 0.0
        %1078 = vmatprep.subr.mxu0 0.0
        %1079 = vmatpush1.msra.mxu0 0.0
        %1080 = vmatprep.subr.mxu0 0.0
        %1081 = vmatpush1.msra.mxu0 0.0
        %1082 = vmatprep.subr.mxu0 0.0
        %1083 = vmatpush1.msra.mxu0 0.0
        %1084 = vmatprep.subr.mxu0 0.0
        %1085 = vmatpush1.msra.mxu0 0.0
        %1086 = vmatprep.subr.mxu0 0.0
        %1087 = vmatpush1.msra.mxu0 0.0
        %1088 = vmatprep.subr.mxu0 0.0
        %1089 = vmatpush1.msra.mxu0 0.0
        %1090 = vmatprep.subr.mxu0 0.0
        %1091 = vmatpush1.msra.mxu0 0.0
        %1092 = vmatprep.subr.mxu0 0.0
        %1093 = vmatpush1.msra.mxu0 0.0
        %1094 = vmatprep.subr.mxu0 0.0
        %1095 = vmatpush1.msra.mxu0 0.0
        %1096 = vmatprep.subr.mxu0 0.0
        %1097 = vmatpush1.msra.mxu0 0.0
        %1098 = vmatprep.subr.mxu0 0.0
        %1099 = vmatpush1.msra.mxu0 0.0
        %1100 = vmatprep.subr.mxu0 0.0
        %1101 = vmatpush1.msra.mxu0 0.0
        %1102 = vmatprep.subr.mxu0 0.0
        %1103 = vmatpush1.msra.mxu0 0.0
        %1104 = vmatprep.subr.mxu0 0.0
        %1105 = vmatpush1.msra.mxu0 0.0
        %1106 = vmatprep.subr.mxu0 0.0
        %1107 = vmatpush1.msra.mxu0 0.0
        %1108 = vmatprep.subr.mxu0 0.0
        %1109 = vmatpush1.msra.mxu0 0.0
        %1110 = vmatprep.subr.mxu0 0.0
        %1111 = vmatpush1.msra.mxu0 0.0
        %1112 = vmatprep.subr.mxu0 0.0
        %1113 = vmatpush1.msra.mxu0 0.0
        %1114 = vmatprep.subr.mxu0 0.0
        %1115 = vmatpush1.msra.mxu0 0.0
        %1116 = vmatprep.subr.mxu0 0.0
        %1117 = vmatpush1.msra.mxu0 0.0
        %1118 = vmatprep.subr.mxu0 0.0
        %1119 = vmatpush1.msra.mxu0 0.0
        %1120 = vmatprep.subr.mxu0 0.0
        %1121 = vmatpush1.msra.mxu0 0.0
        %1122 = vmatprep.subr.mxu0 0.0
        %1123 = vmatpush1.msra.mxu0 0.0
        %1124 = vmatprep.subr.mxu0 0.0
        %1125 = vmatpush1.msra.mxu0 0.0
        %1126 = vmatprep.subr.mxu0 0.0
        %1127 = vmatpush1.msra.mxu0 0.0
        %1128 = vmatprep.subr.mxu0 0.0
        %1129 = vmatpush1.msra.mxu0 0.0
        %1130 = vmatprep.subr.mxu0 0.0
        %1131 = vmatpush1.msra.mxu0 0.0
        %1132 = vmatprep.subr.mxu0 0.0
        %1133 = vmatpush1.msra.mxu0 0.0
        %1134 = vmatprep.mubr.f32.mxu0 0.0
        %1135 = vmatmul.mubr.f32.gmra.mrb[0].mxu0 %v942
        %v1136 = vpop.f32.mrb[0].mxu0
        %v1137 = vadd.f32 %v903, %v1136
        %v1138 = vpop.f32.mrb[0].mxu0
        %1139 = vmatprep.mubr.f32.mxu0 0.0
        %1140 = vmatmul.mubr.f32.gmra.mrb[0].mxu0 %v945
        %v1141 = vpop.f32.mrb[0].mxu0
        %v1142 = vadd.f32 %v908, %v1141
        %v1143 = vpop.f32.mrb[0].mxu0
        %1144 = vmatprep.mubr.f32.mxu0 0.0
        %1145 = vmatmul.mubr.f32.gmra.mrb[0].mxu0 %v948
        %v1146 = vpop.f32.mrb[0].mxu0
        %v1147 = vadd.f32 %v913, %v1146
        %v1148 = vpop.f32.mrb[0].mxu0
        %1149 = vmatprep.mubr.f32.mxu0 0.0
        %1150 = vmatmul.mubr.f32.gmra.mrb[0].mxu0 %v951
        %v1151 = vpop.f32.mrb[0].mxu0
        %v1152 = vadd.f32 %v918, %v1151
        %v1153 = vpop.f32.mrb[0].mxu0
        %1154 = vmatprep.mubr.f32.mxu0 0.0
        %1155 = vmatmul.mubr.f32.gmra.mrb[0].mxu0 %v954
        %v1156 = vpop.f32.mrb[0].mxu0
        %v1157 = vadd.f32 %v923, %v1156
        %v1158 = vpop.f32.mrb[0].mxu0
        %1159 = vmatprep.mubr.f32.mxu0 0.0
        %1160 = vmatmul.mubr.f32.gmra.mrb[0].mxu0 %v957
        %v1161 = vpop.f32.mrb[0].mxu0
        %v1162 = vadd.f32 %v928, %v1161
        %v1163 = vpop.f32.mrb[0].mxu0
        %1164 = vmatprep.mubr.f32.mxu0 0.0
        %1165 = vmatmul.mubr.f32.gmra.mrb[0].mxu0 %v960
        %v1166 = vpop.f32.mrb[0].mxu0
        %v1167 = vadd.f32 %v933, %v1166
        %v1168 = vpop.f32.mrb[0].mxu0
        %1169 = vmatprep.mubr.f32.mxu0 0.0
        %1170 = vmatmul.mubr.f32.gmra.mrb[0].mxu0 %v963
        %v1171 = vpop.f32.mrb[0].mxu0
        %v1172 = vadd.f32 %v938, %v1171
        %v1173 = vpop.f32.mrb[0].mxu0
        %1174 = vdwg.mxu0
        %v1175 = vmul.f32 %v1032, 0.5
        %v1176 = vmul.f32 %v1037, 0.5
        %v1177 = vmul.f32 %v1042, 0.5
        %v1178 = vmul.f32 %v1047, 0.5
        %v1179 = vmul.f32 %v1052, 0.5
        %v1180 = vmul.f32 %v1057, 0.5
        %v1181 = vmul.f32 %v1062, 0.5
        %v1182 = vmul.f32 %v1067, 0.5
        %v1183 = vmul.f32 %v1137, 0.5
        %v1184 = vmul.f32 %v1142, 0.5
        %v1185 = vmul.f32 %v1147, 0.5
        %v1186 = vmul.f32 %v1152, 0.5
        %v1187 = vmul.f32 %v1157, 0.5
        %v1188 = vmul.f32 %v1162, 0.5
        %v1189 = vmul.f32 %v1167, 0.5
        %v1190 = vmul.f32 %v1172, 0.5
        %v1191 = vmul.f32 %v1032, 0.70710677
        %v1192 = vmul.f32 %v1037, 0.70710677
        %v1193 = vmul.f32 %v1042, 0.70710677
        %v1194 = vmul.f32 %v1047, 0.70710677
        %v1195 = vmul.f32 %v1052, 0.70710677
        %v1196 = vmul.f32 %v1057, 0.70710677
        %v1197 = vmul.f32 %v1062, 0.70710677
        %v1198 = vmul.f32 %v1067, 0.70710677
        %v1199 = vmul.f32 %v1137, 0.70710677
        %v1200 = vmul.f32 %v1142, 0.70710677
        %v1201 = vmul.f32 %v1147, 0.70710677
        %v1202 = vmul.f32 %v1152, 0.70710677
        %v1203 = vmul.f32 %v1157, 0.70710677
        %v1204 = vmul.f32 %v1162, 0.70710677
        %v1205 = vmul.f32 %v1167, 0.70710677
        %v1206 = vmul.f32 %v1172, 0.70710677
        %v1207 = verf.f32.pop %v1191
        %v1208 = verf.f32.pop %v1192
        %v1209 = verf.f32.pop %v1193
        %v1210 = verf.f32.pop %v1194
        %v1211 = verf.f32.pop %v1195
        %v1212 = verf.f32.pop %v1196
        %v1213 = verf.f32.pop %v1197
        %v1214 = verf.f32.pop %v1198
        %v1215 = verf.f32.pop %v1199
        %v1216 = verf.f32.pop %v1200
        %v1217 = verf.f32.pop %v1201
        %v1218 = verf.f32.pop %v1202
        %v1219 = verf.f32.pop %v1203
        %v1220 = verf.f32.pop %v1204
        %v1221 = verf.f32.pop %v1205
        %v1222 = verf.f32.pop %v1206
        %v1223 = vadd.f32 %v1207, 1.0
        %v1224 = vadd.f32 %v1208, 1.0
        %v1225 = vadd.f32 %v1209, 1.0
        %v1226 = vadd.f32 %v1210, 1.0
        %v1227 = vadd.f32 %v1211, 1.0
        %v1228 = vadd.f32 %v1212, 1.0
        %v1229 = vadd.f32 %v1213, 1.0
        %v1230 = vadd.f32 %v1214, 1.0
        %v1231 = vadd.f32 %v1215, 1.0
        %v1232 = vadd.f32 %v1216, 1.0
        %v1233 = vadd.f32 %v1217, 1.0
        %v1234 = vadd.f32 %v1218, 1.0
        %v1235 = vadd.f32 %v1219, 1.0
        %v1236 = vadd.f32 %v1220, 1.0
        %v1237 = vadd.f32 %v1221, 1.0
        %v1238 = vadd.f32 %v1222, 1.0
        %v1239 = vmul.f32 %v1175, %v1223
        %v1240 = vmul.f32 %v1176, %v1224
        %v1241 = vmul.f32 %v1177, %v1225
        %v1242 = vmul.f32 %v1178, %v1226
        %v1243 = vmul.f32 %v1179, %v1227
        %v1244 = vmul.f32 %v1180, %v1228
        %v1245 = vmul.f32 %v1181, %v1229
        %v1246 = vmul.f32 %v1182, %v1230
        %v1247 = vmul.f32 %v1183, %v1231
        %v1248 = vmul.f32 %v1184, %v1232
        %v1249 = vmul.f32 %v1185, %v1233
        %v1250 = vmul.f32 %v1186, %v1234
        %v1251 = vmul.f32 %v1187, %v1235
        %v1252 = vmul.f32 %v1188, %v1236
        %v1253 = vmul.f32 %v1189, %v1237
        %v1254 = vmul.f32 %v1190, %v1238
        %v1255 = vld [vmem:[%s657] sm:$0xff]
        %v1256 = vld [vmem:[%s657 + $0x8] sm:$0xff]
        %v1257 = vld [vmem:[%s662] sm:$0xff]
        %v1258 = vld [vmem:[%s662 + $0x8] sm:$0xff]
        %1260 = vset.pattern.permute.xlu0 0
        %1261 = vperm.xlu0 %1260, %v1257
        %v1262 = vpop.permute.xlu0 %1261
        %1265 = vset.pattern.permute.xlu0 0
        %1266 = vperm.xlu0 %1265, %v1258
        %v1267 = vpop.permute.xlu0 %1266
        %vm1269 = vcmask 523264
        %v1271 = vsel %vm1269, %v1255, 0
        %v1274 = vsel %vm1269, %v1256, 0
        %1276 = vmatprep.subr.mxu0 0.0
        %1277 = vmatpush1.msra.mxu0 %v1239
        %1278 = vmatprep.subr.mxu0 0.0
        %1279 = vmatpush1.msra.mxu0 %v1240
        %1280 = vmatprep.subr.mxu0 0.0
        %1281 = vmatpush1.msra.mxu0 %v1241
        %1282 = vmatprep.subr.mxu0 0.0
        %1283 = vmatpush1.msra.mxu0 %v1242
        %1284 = vmatprep.subr.mxu0 0.0
        %1285 = vmatpush1.msra.mxu0 %v1243
        %1286 = vmatprep.subr.mxu0 0.0
        %1287 = vmatpush1.msra.mxu0 %v1244
        %1288 = vmatprep.subr.mxu0 0.0
        %1289 = vmatpush1.msra.mxu0 %v1245
        %1290 = vmatprep.subr.mxu0 0.0
        %1291 = vmatpush1.msra.mxu0 %v1246
        %1292 = vmatprep.subr.mxu0 0.0
        %1293 = vmatpush1.msra.mxu0 0.0
        %1294 = vmatprep.subr.mxu0 0.0
        %1295 = vmatpush1.msra.mxu0 0.0
        %1296 = vmatprep.subr.mxu0 0.0
        %1297 = vmatpush1.msra.mxu0 0.0
        %1298 = vmatprep.subr.mxu0 0.0
        %1299 = vmatpush1.msra.mxu0 0.0
        %1300 = vmatprep.subr.mxu0 0.0
        %1301 = vmatpush1.msra.mxu0 0.0
        %1302 = vmatprep.subr.mxu0 0.0
        %1303 = vmatpush1.msra.mxu0 0.0
        %1304 = vmatprep.subr.mxu0 0.0
        %1305 = vmatpush1.msra.mxu0 0.0
        %1306 = vmatprep.subr.mxu0 0.0
        %1307 = vmatpush1.msra.mxu0 0.0
        %1308 = vmatprep.subr.mxu0 0.0
        %1309 = vmatpush1.msra.mxu0 0.0
        %1310 = vmatprep.subr.mxu0 0.0
        %1311 = vmatpush1.msra.mxu0 0.0
        %1312 = vmatprep.subr.mxu0 0.0
        %1313 = vmatpush1.msra.mxu0 0.0
        %1314 = vmatprep.subr.mxu0 0.0
        %1315 = vmatpush1.msra.mxu0 0.0
        %1316 = vmatprep.subr.mxu0 0.0
        %1317 = vmatpush1.msra.mxu0 0.0
        %1318 = vmatprep.subr.mxu0 0.0
        %1319 = vmatpush1.msra.mxu0 0.0
        %1320 = vmatprep.subr.mxu0 0.0
        %1321 = vmatpush1.msra.mxu0 0.0
        %1322 = vmatprep.subr.mxu0 0.0
        %1323 = vmatpush1.msra.mxu0 0.0
        %1324 = vmatprep.subr.mxu0 0.0
        %1325 = vmatpush1.msra.mxu0 0.0
        %1326 = vmatprep.subr.mxu0 0.0
        %1327 = vmatpush1.msra.mxu0 0.0
        %1328 = vmatprep.subr.mxu0 0.0
        %1329 = vmatpush1.msra.mxu0 0.0
        %1330 = vmatprep.subr.mxu0 0.0
        %1331 = vmatpush1.msra.mxu0 0.0
        %1332 = vmatprep.subr.mxu0 0.0
        %1333 = vmatpush1.msra.mxu0 0.0
        %1334 = vmatprep.subr.mxu0 0.0
        %1335 = vmatpush1.msra.mxu0 0.0
        %1336 = vmatprep.subr.mxu0 0.0
        %1337 = vmatpush1.msra.mxu0 0.0
        %1338 = vmatprep.subr.mxu0 0.0
        %1339 = vmatpush1.msra.mxu0 0.0
        %1340 = vmatprep.mubr.f32.mxu0 0.0
        %1341 = vmatmul.mubr.f32.gmra.mrb[0].mxu0 %v1271
        %v1342 = vpop.f32.mrb[0].mxu0
        %v1343 = vadd.f32 %v1262, %v1342
        %v1344 = vpop.f32.mrb[0].mxu0
        %1345 = vmatprep.mubr.f32.mxu0 0.0
        %1346 = vmatmul.mubr.f32.gmra.mrb[0].mxu0 %v1274
        %v1347 = vpop.f32.mrb[0].mxu0
        %v1348 = vadd.f32 %v1267, %v1347
        %v1349 = vpop.f32.mrb[0].mxu0
        %1350 = vdwg.mxu0
        %1351 = vmatprep.subr.mxu0 0.0
        %1352 = vmatpush1.msra.mxu0 %v1247
        %1353 = vmatprep.subr.mxu0 0.0
        %1354 = vmatpush1.msra.mxu0 %v1248
        %1355 = vmatprep.subr.mxu0 0.0
        %1356 = vmatpush1.msra.mxu0 %v1249
        %1357 = vmatprep.subr.mxu0 0.0
        %1358 = vmatpush1.msra.mxu0 %v1250
        %1359 = vmatprep.subr.mxu0 0.0
        %1360 = vmatpush1.msra.mxu0 %v1251
        %1361 = vmatprep.subr.mxu0 0.0
        %1362 = vmatpush1.msra.mxu0 %v1252
        %1363 = vmatprep.subr.mxu0 0.0
        %1364 = vmatpush1.msra.mxu0 %v1253
        %1365 = vmatprep.subr.mxu0 0.0
        %1366 = vmatpush1.msra.mxu0 %v1254
        %1367 = vmatprep.subr.mxu0 0.0
        %1368 = vmatpush1.msra.mxu0 0.0
        %1369 = vmatprep.subr.mxu0 0.0
        %1370 = vmatpush1.msra.mxu0 0.0
        %1371 = vmatprep.subr.mxu0 0.0
        %1372 = vmatpush1.msra.mxu0 0.0
        %1373 = vmatprep.subr.mxu0 0.0
        %1374 = vmatpush1.msra.mxu0 0.0
        %1375 = vmatprep.subr.mxu0 0.0
        %1376 = vmatpush1.msra.mxu0 0.0
        %1377 = vmatprep.subr.mxu0 0.0
        %1378 = vmatpush1.msra.mxu0 0.0
        %1379 = vmatprep.subr.mxu0 0.0
        %1380 = vmatpush1.msra.mxu0 0.0
        %1381 = vmatprep.subr.mxu0 0.0
        %1382 = vmatpush1.msra.mxu0 0.0
        %1383 = vmatprep.subr.mxu0 0.0
        %1384 = vmatpush1.msra.mxu0 0.0
        %1385 = vmatprep.subr.mxu0 0.0
        %1386 = vmatpush1.msra.mxu0 0.0
        %1387 = vmatprep.subr.mxu0 0.0
        %1388 = vmatpush1.msra.mxu0 0.0
        %1389 = vmatprep.subr.mxu0 0.0
        %1390 = vmatpush1.msra.mxu0 0.0
        %1391 = vmatprep.subr.mxu0 0.0
        %1392 = vmatpush1.msra.mxu0 0.0
        %1393 = vmatprep.subr.mxu0 0.0
        %1394 = vmatpush1.msra.mxu0 0.0
        %1395 = vmatprep.subr.mxu0 0.0
        %1396 = vmatpush1.msra.mxu0 0.0
        %1397 = vmatprep.subr.mxu0 0.0
        %1398 = vmatpush1.msra.mxu0 0.0
        %1399 = vmatprep.subr.mxu0 0.0
        %1400 = vmatpush1.msra.mxu0 0.0
        %1401 = vmatprep.subr.mxu0 0.0
        %1402 = vmatpush1.msra.mxu0 0.0
        %1403 = vmatprep.subr.mxu0 0.0
        %1404 = vmatpush1.msra.mxu0 0.0
        %1405 = vmatprep.subr.mxu0 0.0
        %1406 = vmatpush1.msra.mxu0 0.0
        %1407 = vmatprep.subr.mxu0 0.0
        %1408 = vmatpush1.msra.mxu0 0.0
        %1409 = vmatprep.subr.mxu0 0.0
        %1410 = vmatpush1.msra.mxu0 0.0
        %1411 = vmatprep.subr.mxu0 0.0
        %1412 = vmatpush1.msra.mxu0 0.0
        %1413 = vmatprep.subr.mxu0 0.0
        %1414 = vmatpush1.msra.mxu0 0.0
        %1415 = vmatprep.mubr.f32.mxu0 0.0
        %1416 = vmatmul.mubr.f32.gmra.mrb[0].mxu0 %v1271
        %v1417 = vpop.f32.mrb[0].mxu0
        %v1418 = vadd.f32 %v1262, %v1417
        %v1419 = vpop.f32.mrb[0].mxu0
        %1420 = vmatprep.mubr.f32.mxu0 0.0
        %1421 = vmatmul.mubr.f32.gmra.mrb[0].mxu0 %v1274
        %v1422 = vpop.f32.mrb[0].mxu0
        %v1423 = vadd.f32 %v1267, %v1422
        %v1424 = vpop.f32.mrb[0].mxu0
        %1425 = vdwg.mxu0
        %v1426 = vadd.f32 %v804, %v1343
        %v1427 = vadd.f32 %v805, %v1348
        %v1428 = vadd.f32 %v806, %v1418
        %v1429 = vadd.f32 %v807, %v1423
        %v1430 = vsel %vm810, %v1426, 0.0
        %1431 = vadd.xlane.f32.xlu0 %v1430
        %v1432 = vpop.xlane.xlu0 %1431
        %v1433 = vsel %vm810, %v1427, 0.0
        %1434 = vadd.xlane.f32.xlu0 %v1433
        %v1435 = vpop.xlane.xlu0 %1434
        %v1436 = vsel %vm810, %v1428, 0.0
        %1437 = vadd.xlane.f32.xlu0 %v1436
        %v1438 = vpop.xlane.xlu0 %1437
        %v1439 = vsel %vm810, %v1429, 0.0
        %1440 = vadd.xlane.f32.xlu0 %v1439
        %v1441 = vpop.xlane.xlu0 %1440
        %v1442 = vmul.f32 %v1432, %v823
        %v1443 = vmul.f32 %v1435, %v823
        %v1444 = vmul.f32 %v1438, %v823
        %v1445 = vmul.f32 %v1441, %v823
        %v1446 = vsub.f32 %v1426, %v1442
        %v1447 = vsub.f32 %v1427, %v1443
        %v1448 = vsub.f32 %v1428, %v1444
        %v1449 = vsub.f32 %v1429, %v1445
        %v1450 = vmul.f32 %v1446, %v1446
        %v1451 = vmul.f32 %v1447, %v1447
        %v1452 = vmul.f32 %v1448, %v1448
        %v1453 = vmul.f32 %v1449, %v1449
        %v1454 = vsel %vm810, %v1450, 0.0
        %1455 = vadd.xlane.f32.xlu0 %v1454
        %v1456 = vpop.xlane.xlu0 %1455
        %v1457 = vsel %vm810, %v1451, 0.0
        %1458 = vadd.xlane.f32.xlu0 %v1457
        %v1459 = vpop.xlane.xlu0 %1458
        %v1460 = vsel %vm810, %v1452, 0.0
        %1461 = vadd.xlane.f32.xlu0 %v1460
        %v1462 = vpop.xlane.xlu0 %1461
        %v1463 = vsel %vm810, %v1453, 0.0
        %1464 = vadd.xlane.f32.xlu0 %v1463
        %v1465 = vpop.xlane.xlu0 %1464
        %v1466 = vmul.f32 %v1456, %v823
        %v1467 = vmul.f32 %v1459, %v823
        %v1468 = vmul.f32 %v1462, %v823
        %v1469 = vmul.f32 %v1465, %v823
        %v1470 = vadd.f32 %v1466, 1e-05
        %v1471 = vadd.f32 %v1467, 1e-05
        %v1472 = vadd.f32 %v1468, 1e-05
        %v1473 = vadd.f32 %v1469, 1e-05
        %v1474 = vrsqrt.pop %v1470
        %v1475 = vrsqrt.pop %v1471
        %v1476 = vrsqrt.pop %v1472
        %v1477 = vrsqrt.pop %v1473
        %v1478 = vmul.f32 %v1446, %v1474
        %v1479 = vmul.f32 %v1447, %v1475
        %v1480 = vmul.f32 %v1448, %v1476
        %v1481 = vmul.f32 %v1449, %v1477
        %v1482 = vmul.f32 %v1478, %v868
        %v1483 = vmul.f32 %v1479, %v868
        %v1484 = vmul.f32 %v1480, %v868
        %v1485 = vmul.f32 %v1481, %v868
        %v1486 = vadd.f32 %v1482, %v878
        %v1487 = vadd.f32 %v1483, %v878
        %v1488 = vadd.f32 %v1484, %v878
        %v1489 = vadd.f32 %v1485, %v878
        %v1490 = vld [vmem:[%s667] sm:$0xff]
        %v1491 = vld [vmem:[%s667 + $0x8] sm:$0xff]
        %v1492 = vld [vmem:[%s667 + $0x10] sm:$0xff]
        %v1493 = vld [vmem:[%s667 + $0x18] sm:$0xff]
        %v1494 = vld [vmem:[%s670] sm:$0x1]
        %v1496 = vlaneseq
        %v1497 = vshrl.u32 %v1496, 7
        %v1498 = vsub.s32 0, %v1497
        %v1499 = vrot.slane %v1494, %v1498
        %v1502 = vsel %vm810, %v1486, 0
        %v1505 = vsel %vm810, %v1487, 0
        %v1508 = vsel %vm810, %v1488, 0
        %v1511 = vsel %vm810, %v1489, 0
        %1513 = vmatprep.subr.mxu0 0.0
        %1514 = vmatpush1.msra.mxu0 %v1490
        %1515 = vmatprep.subr.mxu0 0.0
        %1516 = vmatpush1.msra.mxu0 %v1491
        %1517 = vmatprep.subr.mxu0 0.0
        %1518 = vmatpush1.msra.mxu0 %v1492
        %1519 = vmatprep.subr.mxu0 0.0
        %1520 = vmatpush1.msra.mxu0 %v1493
        %1521 = vmatprep.subr.mxu0 0.0
        %1522 = vmatpush1.msra.mxu0 0.0
        %1523 = vmatprep.subr.mxu0 0.0
        %1524 = vmatpush1.msra.mxu0 0.0
        %1525 = vmatprep.subr.mxu0 0.0
        %1526 = vmatpush1.msra.mxu0 0.0
        %1527 = vmatprep.subr.mxu0 0.0
        %1528 = vmatpush1.msra.mxu0 0.0
        %1529 = vmatprep.subr.mxu0 0.0
        %1530 = vmatpush1.msra.mxu0 0.0
        %1531 = vmatprep.subr.mxu0 0.0
        %1532 = vmatpush1.msra.mxu0 0.0
        %1533 = vmatprep.subr.mxu0 0.0
        %1534 = vmatpush1.msra.mxu0 0.0
        %1535 = vmatprep.subr.mxu0 0.0
        %1536 = vmatpush1.msra.mxu0 0.0
        %1537 = vmatprep.subr.mxu0 0.0
        %1538 = vmatpush1.msra.mxu0 0.0
        %1539 = vmatprep.subr.mxu0 0.0
        %1540 = vmatpush1.msra.mxu0 0.0
        %1541 = vmatprep.subr.mxu0 0.0
        %1542 = vmatpush1.msra.mxu0 0.0
        %1543 = vmatprep.subr.mxu0 0.0
        %1544 = vmatpush1.msra.mxu0 0.0
        %1545 = vmatprep.subr.mxu0 0.0
        %1546 = vmatpush1.msra.mxu0 0.0
        %1547 = vmatprep.subr.mxu0 0.0
        %1548 = vmatpush1.msra.mxu0 0.0
        %1549 = vmatprep.subr.mxu0 0.0
        %1550 = vmatpush1.msra.mxu0 0.0
        %1551 = vmatprep.subr.mxu0 0.0
        %1552 = vmatpush1.msra.mxu0 0.0
        %1553 = vmatprep.subr.mxu0 0.0
        %1554 = vmatpush1.msra.mxu0 0.0
        %1555 = vmatprep.subr.mxu0 0.0
        %1556 = vmatpush1.msra.mxu0 0.0
        %1557 = vmatprep.subr.mxu0 0.0
        %1558 = vmatpush1.msra.mxu0 0.0
        %1559 = vmatprep.subr.mxu0 0.0
        %1560 = vmatpush1.msra.mxu0 0.0
        %1561 = vmatprep.subr.mxu0 0.0
        %1562 = vmatpush1.msra.mxu0 0.0
        %1563 = vmatprep.subr.mxu0 0.0
        %1564 = vmatpush1.msra.mxu0 0.0
        %1565 = vmatprep.subr.mxu0 0.0
        %1566 = vmatpush1.msra.mxu0 0.0
        %1567 = vmatprep.subr.mxu0 0.0
        %1568 = vmatpush1.msra.mxu0 0.0
        %1569 = vmatprep.subr.mxu0 0.0
        %1570 = vmatpush1.msra.mxu0 0.0
        %1571 = vmatprep.subr.mxu0 0.0
        %1572 = vmatpush1.msra.mxu0 0.0
        %1573 = vmatprep.subr.mxu0 0.0
        %1574 = vmatpush1.msra.mxu0 0.0
        %1575 = vmatprep.subr.mxu0 0.0
        %1576 = vmatpush1.msra.mxu0 0.0
        %1577 = vmatprep.mubr.f32.mxu0 0.0
        %1578 = vmatmul.mubr.f32.gmra.mrb[0].mxu0 %v1502
        %v1579 = vpop.f32.mrb[0].mxu0
        %v1580 = vadd.f32 %v1499, %v1579
        %v1581 = vpop.f32.mrb[0].mxu0
        %1582 = vmatprep.mubr.f32.mxu0 0.0
        %1583 = vmatmul.mubr.f32.gmra.mrb[0].mxu0 %v1505
        %v1584 = vpop.f32.mrb[0].mxu0
        %v1585 = vadd.f32 %v1499, %v1584
        %v1586 = vpop.f32.mrb[0].mxu0
        %1587 = vmatprep.mubr.f32.mxu0 0.0
        %1588 = vmatmul.mubr.f32.gmra.mrb[0].mxu0 %v1508
        %v1589 = vpop.f32.mrb[0].mxu0
        %v1590 = vadd.f32 %v1499, %v1589
        %v1591 = vpop.f32.mrb[0].mxu0
        %1592 = vmatprep.mubr.f32.mxu0 0.0
        %1593 = vmatmul.mubr.f32.gmra.mrb[0].mxu0 %v1511
        %v1594 = vpop.f32.mrb[0].mxu0
        %v1595 = vadd.f32 %v1499, %v1594
        %v1596 = vpop.f32.mrb[0].mxu0
        %1597 = vdwg.mxu0
        %v1598 = vmul.f32 %v1580, 0.5
        %v1599 = vmul.f32 %v1585, 0.5
        %v1600 = vmul.f32 %v1590, 0.5
        %v1601 = vmul.f32 %v1595, 0.5
        %v1602 = vmul.f32 %v1580, 0.70710677
        %v1603 = vmul.f32 %v1585, 0.70710677
        %v1604 = vmul.f32 %v1590, 0.70710677
        %v1605 = vmul.f32 %v1595, 0.70710677
        %v1606 = verf.f32.pop %v1602
        %v1607 = verf.f32.pop %v1603
        %v1608 = verf.f32.pop %v1604
        %v1609 = verf.f32.pop %v1605
        %v1610 = vadd.f32 %v1606, 1.0
        %v1611 = vadd.f32 %v1607, 1.0
        %v1612 = vadd.f32 %v1608, 1.0
        %v1613 = vadd.f32 %v1609, 1.0
        %v1614 = vmul.f32 %v1598, %v1610
        %v1615 = vmul.f32 %v1599, %v1611
        %v1616 = vmul.f32 %v1600, %v1612
        %v1617 = vmul.f32 %v1601, %v1613
        %v1618 = vld [vmem:[%s675] sm:$0xff]
        %v1619 = vld [vmem:[%s675 + $0x8] sm:$0xff]
        %v1620 = vld [vmem:[%s678] sm:$0x1]
        %v1622 = vlaneseq
        %v1623 = vshrl.u32 %v1622, 7
        %v1624 = vsub.s32 0, %v1623
        %v1625 = vrot.slane %v1620, %v1624
        %v1628 = vsel %vm940, %v1614, 0
        %v1631 = vsel %vm940, %v1615, 0
        %v1634 = vsel %vm940, %v1616, 0
        %v1637 = vsel %vm940, %v1617, 0
        %1639 = vmatprep.subr.mxu0 0.0
        %1640 = vmatpush1.msra.mxu0 %v1618
        %1641 = vmatprep.subr.mxu0 0.0
        %1642 = vmatpush1.msra.mxu0 %v1619
        %1643 = vmatprep.subr.mxu0 0.0
        %1644 = vmatpush1.msra.mxu0 0.0
        %1645 = vmatprep.subr.mxu0 0.0
        %1646 = vmatpush1.msra.mxu0 0.0
        %1647 = vmatprep.subr.mxu0 0.0
        %1648 = vmatpush1.msra.mxu0 0.0
        %1649 = vmatprep.subr.mxu0 0.0
        %1650 = vmatpush1.msra.mxu0 0.0
        %1651 = vmatprep.subr.mxu0 0.0
        %1652 = vmatpush1.msra.mxu0 0.0
        %1653 = vmatprep.subr.mxu0 0.0
        %1654 = vmatpush1.msra.mxu0 0.0
        %1655 = vmatprep.subr.mxu0 0.0
        %1656 = vmatpush1.msra.mxu0 0.0
        %1657 = vmatprep.subr.mxu0 0.0
        %1658 = vmatpush1.msra.mxu0 0.0
        %1659 = vmatprep.subr.mxu0 0.0
        %1660 = vmatpush1.msra.mxu0 0.0
        %1661 = vmatprep.subr.mxu0 0.0
        %1662 = vmatpush1.msra.mxu0 0.0
        %1663 = vmatprep.subr.mxu0 0.0
        %1664 = vmatpush1.msra.mxu0 0.0
        %1665 = vmatprep.subr.mxu0 0.0
        %1666 = vmatpush1.msra.mxu0 0.0
        %1667 = vmatprep.subr.mxu0 0.0
        %1668 = vmatpush1.msra.mxu0 0.0
        %1669 = vmatprep.subr.mxu0 0.0
        %1670 = vmatpush1.msra.mxu0 0.0
        %1671 = vmatprep.subr.mxu0 0.0
        %1672 = vmatpush1.msra.mxu0 0.0
        %1673 = vmatprep.subr.mxu0 0.0
        %1674 = vmatpush1.msra.mxu0 0.0
        %1675 = vmatprep.subr.mxu0 0.0
        %1676 = vmatpush1.msra.mxu0 0.0
        %1677 = vmatprep.subr.mxu0 0.0
        %1678 = vmatpush1.msra.mxu0 0.0
        %1679 = vmatprep.subr.mxu0 0.0
        %1680 = vmatpush1.msra.mxu0 0.0
        %1681 = vmatprep.subr.mxu0 0.0
        %1682 = vmatpush1.msra.mxu0 0.0
        %1683 = vmatprep.subr.mxu0 0.0
        %1684 = vmatpush1.msra.mxu0 0.0
        %1685 = vmatprep.subr.mxu0 0.0
        %1686 = vmatpush1.msra.mxu0 0.0
        %1687 = vmatprep.subr.mxu0 0.0
        %1688 = vmatpush1.msra.mxu0 0.0
        %1689 = vmatprep.subr.mxu0 0.0
        %1690 = vmatpush1.msra.mxu0 0.0
        %1691 = vmatprep.subr.mxu0 0.0
        %1692 = vmatpush1.msra.mxu0 0.0
        %1693 = vmatprep.subr.mxu0 0.0
        %1694 = vmatpush1.msra.mxu0 0.0
        %1695 = vmatprep.subr.mxu0 0.0
        %1696 = vmatpush1.msra.mxu0 0.0
        %1697 = vmatprep.subr.mxu0 0.0
        %1698 = vmatpush1.msra.mxu0 0.0
        %1699 = vmatprep.subr.mxu0 0.0
        %1700 = vmatpush1.msra.mxu0 0.0
        %1701 = vmatprep.subr.mxu0 0.0
        %1702 = vmatpush1.msra.mxu0 0.0
        %1703 = vmatprep.mubr.f32.mxu0 0.0
        %1704 = vmatmul.mubr.f32.gmra.mrb[0].mxu0 %v1628
        %v1705 = vpop.f32.mrb[0].mxu0
        %v1706 = vadd.f32 %v1625, %v1705
        %v1707 = vpop.f32.mrb[0].mxu0
        %1708 = vmatprep.mubr.f32.mxu0 0.0
        %1709 = vmatmul.mubr.f32.gmra.mrb[0].mxu0 %v1631
        %v1710 = vpop.f32.mrb[0].mxu0
        %v1711 = vadd.f32 %v1625, %v1710
        %v1712 = vpop.f32.mrb[0].mxu0
        %1713 = vmatprep.mubr.f32.mxu0 0.0
        %1714 = vmatmul.mubr.f32.gmra.mrb[0].mxu0 %v1634
        %v1715 = vpop.f32.mrb[0].mxu0
        %v1716 = vadd.f32 %v1625, %v1715
        %v1717 = vpop.f32.mrb[0].mxu0
        %1718 = vmatprep.mubr.f32.mxu0 0.0
        %1719 = vmatmul.mubr.f32.gmra.mrb[0].mxu0 %v1637
        %v1720 = vpop.f32.mrb[0].mxu0
        %v1721 = vadd.f32 %v1625, %v1720
        %v1722 = vpop.f32.mrb[0].mxu0
        %1723 = vdwg.mxu0
        %v1724 = vadd.f32 %v1426, %v1706
        %v1725 = vadd.f32 %v1427, %v1711
        %v1726 = vadd.f32 %v1428, %v1716
        %v1727 = vadd.f32 %v1429, %v1721
        %1728 = vst.msk [vmem:[#allocation2] sm:$0xff] %vm810, %v1724
        %1729 = vst.msk [vmem:[#allocation2 + $0x8] sm:$0xff] %vm810, %v1725
        %1730 = vst.msk [vmem:[#allocation2 + $0x10] sm:$0xff] %vm810, %v1726
        %1731 = vst.msk [vmem:[#allocation2 + $0x18] sm:$0xff] %vm810, %v1727
        %p1732 = scmp.eq.s32.totalorder %s32, 1
        // Predicated region
        $region85: #{tpu_custom_call.1} parent=79 // pred_check
          %p1733 = pneg %p1732
        $region86: #{tpu_custom_call.1} parent=79 // pred_check_branch
          %1735 = sbr.rel (%p1733) target = $region88
        $region87: #{tpu_custom_call.1} parent=79 // pred_region
          %v1736 = vld [vmem:[%s13] sm:$0x1]
          %v1737 = vld [vmem:[%s14] sm:$0x1]
          %v1738 = vsel %vm810, %v1724, 0.0
          %1739 = vadd.xlane.f32.xlu0 %v1738
          %v1740 = vpop.xlane.xlu0 %1739
          %v1741 = vsel %vm810, %v1725, 0.0
          %1742 = vadd.xlane.f32.xlu0 %v1741
          %v1743 = vpop.xlane.xlu0 %1742
          %v1744 = vsel %vm810, %v1726, 0.0
          %1745 = vadd.xlane.f32.xlu0 %v1744
          %v1746 = vpop.xlane.xlu0 %1745
          %v1747 = vsel %vm810, %v1727, 0.0
          %1748 = vadd.xlane.f32.xlu0 %v1747
          %v1749 = vpop.xlane.xlu0 %1748
          %v1750 = vmul.f32 %v1740, %v823
          %v1751 = vmul.f32 %v1743, %v823
          %v1752 = vmul.f32 %v1746, %v823
          %v1753 = vmul.f32 %v1749, %v823
          %v1754 = vsub.f32 %v1724, %v1750
          %v1755 = vsub.f32 %v1725, %v1751
          %v1756 = vsub.f32 %v1726, %v1752
          %v1757 = vsub.f32 %v1727, %v1753
          %v1758 = vmul.f32 %v1754, %v1754
          %v1759 = vmul.f32 %v1755, %v1755
          %v1760 = vmul.f32 %v1756, %v1756
          %v1761 = vmul.f32 %v1757, %v1757
          %v1762 = vsel %vm810, %v1758, 0.0
          %1763 = vadd.xlane.f32.xlu0 %v1762
          %v1764 = vpop.xlane.xlu0 %1763
          %v1765 = vsel %vm810, %v1759, 0.0
          %1766 = vadd.xlane.f32.xlu0 %v1765
          %v1767 = vpop.xlane.xlu0 %1766
          %v1768 = vsel %vm810, %v1760, 0.0
          %1769 = vadd.xlane.f32.xlu0 %v1768
          %v1770 = vpop.xlane.xlu0 %1769
          %v1771 = vsel %vm810, %v1761, 0.0
          %1772 = vadd.xlane.f32.xlu0 %v1771
          %v1773 = vpop.xlane.xlu0 %1772
          %v1774 = vmul.f32 %v1764, %v823
          %v1775 = vmul.f32 %v1767, %v823
          %v1776 = vmul.f32 %v1770, %v823
          %v1777 = vmul.f32 %v1773, %v823
          %v1778 = vadd.f32 %v1774, 1e-05
          %v1779 = vadd.f32 %v1775, 1e-05
          %v1780 = vadd.f32 %v1776, 1e-05
          %v1781 = vadd.f32 %v1777, 1e-05
          %v1782 = vrsqrt.pop %v1778
          %v1783 = vrsqrt.pop %v1779
          %v1784 = vrsqrt.pop %v1780
          %v1785 = vrsqrt.pop %v1781
          %v1786 = vmul.f32 %v1754, %v1782
          %v1787 = vmul.f32 %v1755, %v1783
          %v1788 = vmul.f32 %v1756, %v1784
          %v1789 = vmul.f32 %v1757, %v1785
          %v1791 = vlaneseq
          %v1792 = vshrl.u32 %v1791, 7
          %v1793 = vsub.s32 0, %v1792
          %v1794 = vrot.slane %v1736, %v1793
          %v1796 = vmul.f32 %v1786, %v1794
          %v1797 = vmul.f32 %v1787, %v1794
          %v1798 = vmul.f32 %v1788, %v1794
          %v1799 = vmul.f32 %v1789, %v1794
          %v1801 = vlaneseq
          %v1802 = vshrl.u32 %v1801, 7
          %v1803 = vsub.s32 0, %v1802
          %v1804 = vrot.slane %v1737, %v1803
          %v1806 = vadd.f32 %v1796, %v1804
          %v1807 = vadd.f32 %v1797, %v1804
          %v1808 = vadd.f32 %v1798, %v1804
          %v1809 = vadd.f32 %v1799, %v1804
          %1810 = vst.msk [vmem:[#allocation3] sm:$0xff] %vm810, %v1806
          %1811 = vst.msk [vmem:[#allocation3 + $0x8] sm:$0xff] %vm810, %v1807
          %1812 = vst.msk [vmem:[#allocation3 + $0x10] sm:$0xff] %vm810, %v1808
          %1813 = vst.msk [vmem:[#allocation3 + $0x18] sm:$0xff] %vm810, %v1809
        $region88: #{tpu_custom_call.1} parent=79 // pred_fallthru
          _
        // Predicated region
        $region89: #{tpu_custom_call.1} parent=79 // pred_check
          %p1814 = pneg %p427
        $region90: #{tpu_custom_call.1} parent=79 // pred_check_branch
          %1816 = sbr.rel (%p1814) target = $region92
        $region91: #{tpu_custom_call.1} parent=79 // pred_region
          %s1817 = smul.u32 2, %s31
          %s1819 = ssub.s32 512, 512
          %1820 = vsyncadd [#allocation4], %s1819
          %s1821 = smul.addr %s1817, 2
          %s1822 = smul.addr %s1821, 128
          %s1823 = scalar_lea.hbm %s15, %s1822
          %s1824 = sshll.u32 [#allocation3], 4
          %s1825 = int_to_ptr.vmem [resolvable:$true] %s1824
          %1830 = dma.vmem_to_hbm [thread:$0]  %s1825, 512, %s1823, [#allocation4], 128, 128, 8
        $region92: #{tpu_custom_call.1} parent=79 // pred_fallthru
          _
        // Predicated region
        $region93: #{tpu_custom_call.1} parent=79 // pred_check
          %p1831 = pneg %p427
        $region94: #{tpu_custom_call.1} parent=79 // pred_check_branch
          %1833 = sbr.rel (%p1831) target = $region96
        $region95: #{tpu_custom_call.1} parent=79 // pred_region
          %1834 = dma.done [#allocation4], 512
        $region96: #{tpu_custom_call.1} parent=79 // pred_fallthru
          _
      $region80: #{tpu_custom_call.1} parent=5 // pred_fallthru
        _
      %p1835 = scmp.le.s32.totalorder 2, %s22
      // Predicated region
      $region97: #{tpu_custom_call.1} parent=5 // pred_check
        %p1836 = pneg %p1835
      $region98: #{tpu_custom_call.1} parent=5 // pred_check_branch
        %1838 = sbr.rel (%p1836) target = $region100
      $region99: #{tpu_custom_call.1} parent=5 // pred_region
        %s1839 = ssub.s32 %s22, 2
      $region100: #{tpu_custom_call.1} parent=5 // pred_fallthru
        _
    $region6: #{tpu_custom_call.1} parent=1 // loop_footer
      %s26 = sadd.s32 1, %s22
    $region7: #{tpu_custom_call.1} parent=1 // loop_footer_branch
      %21 = sbr.rel target = $region3
    $region8: #{tpu_custom_call.1} parent=1 // loop_exit
      _
    %1840 = vsyncpa [#allocation4], 1
    %s1841 = scalar_lea.sflag [#allocation4], 1
    %1842 = vsyncpa %s1841, 1

</llo_original>
